<compile_context>
chip_gen: v5e
topology: v5e:2x2
jax: 0.10.0
libtpu: 0.0.40
codegen_flags: <defaults>
</compile_context>

<pallas_src>
import numpy as np
import jax
import jax.numpy as jnp
from jax.experimental import pallas as pl
from jax.experimental.pallas import tpu as pltpu

# ----------------------- SelfAttentionConfig (synthetic) -----------------------
IN_MV = 4      # in_mv_channels
IN_S = 8       # in_s_channels
HID_MV = 2     # hidden_mv_channels
HID_S = 4      # hidden_s_channels
HEADS = 2      # num_heads
ADD_MV = 0     # additional_qk_mv_channels
ADD_S = 0      # additional_qk_s_channels

MV_DIM = 16
EPS_MV = 0.01   # EquiLayerNorm epsilon
EPS_S = 1e-5    # torch.nn.functional.layer_norm default eps

HIGH = jax.lax.Precision.HIGHEST

N_MV_GROUPS = HEADS + 2            # q heads + k + v
MV_GROUP_W = HID_MV * MV_DIM       # 32
S_GROUP_W = HID_S                  # 4
MV_OUT_W = N_MV_GROUPS * MV_GROUP_W   # 128  (lane-dense)
S_OUT_W = N_MV_GROUPS * S_GROUP_W     # 16

_GRADE = np.array([0, 1, 1, 1, 1, 2, 2, 2, 2, 2, 2, 3, 3, 3, 3, 4])
# components whose blade does NOT contain e0 (these contribute to the invariant squared norm)
_NO_E0 = np.array([1, 0, 1, 1, 1, 0, 0, 0, 1, 1, 1, 0, 0, 0, 1, 0], dtype=np.float32)


def _pin_linear_basis():
    """9-dim basis of Pin(3,0,1)-equivariant linear maps: 5 grade projections + 4 e0-mult maps."""
    basis = np.zeros((9, 16, 16), dtype=np.float32)
    for g in range(5):
        idx = np.where(_GRADE == g)[0]
        basis[g, idx, idx] = 1.0
    e0_map = {0: 1, 2: 5, 3: 6, 4: 7, 8: 11, 9: 12, 10: 13, 14: 15}  # src comp -> e0*src comp
    for src, dst in e0_map.items():
        basis[5 + _GRADE[src], dst, src] = 1.0
    return basis


# ----------------------------- parameter setup -----------------------------
def _init_equilinear(key, ci, si, co, so, scale=0.2):
    ks = jax.random.split(key, 6)
    return dict(
        coeffs=scale * jax.random.normal(ks[0], (co, ci, 9), jnp.float32),
        s2mvs_w=scale * jax.random.normal(ks[1], (co, si), jnp.float32),
        s2mvs_b=scale * jax.random.normal(ks[2], (co,), jnp.float32),
        mvs2s_w=scale * jax.random.normal(ks[3], (so, ci), jnp.float32),
        mvs2s_b=scale * jax.random.normal(ks[4], (so,), jnp.float32),
        s2s_w=scale * jax.random.normal(ks[5], (so, si), jnp.float32),
        s2s_b=jnp.zeros((so,), jnp.float32),
    )


def _fold_equilinear(p, ci, si, co, so, basis):
    """Fold one EquiLinear into a dense affine map on [mv_flat | scalars] -> [mv_flat | scalars]."""
    wmm = jnp.einsum("oxa,aij->xjoi", p["coeffs"], jnp.asarray(basis),
                     precision=HIGH).reshape(ci * 16, co * 16)
    W = jnp.zeros((ci * 16 + si, co * 16 + so), jnp.float32)
    W = W.at[: ci * 16, : co * 16].set(wmm)
    W = W.at[ci * 16:, 0: co * 16: 16].set(p["s2mvs_w"].T)    # scalars -> mv scalar component
    W = W.at[0: ci * 16: 16, co * 16:].set(p["mvs2s_w"].T)    # mv scalar component -> scalars
    W = W.at[ci * 16:, co * 16:].set(p["s2s_w"].T)            # scalars -> scalars
    b = jnp.zeros((co * 16 + so,), jnp.float32)
    b = b.at[0: co * 16: 16].set(p["s2mvs_b"])
    b = b.at[co * 16:].set(p["mvs2s_b"] + p["s2s_b"])
    return W, b


def _q_head_major_perm():
    """Permute q-output columns from torch layout c = hc*H + h to head-major [h, hc, comp]."""
    co_q = HID_MV * HEADS
    perm = []
    for h in range(HEADS):
        for hc in range(HID_MV):
            c = hc * HEADS + h
            perm.extend(c * 16 + comp for comp in range(16))
    for h in range(HEADS):
        for sc in range(HID_S):
            perm.append(co_q * 16 + sc * HEADS + h)
    return np.array(perm)


def _build_norm_mats():
    """Block-constant group-averaging matrices for the in-kernel norms (built once)."""
    # mv: (y*y) @ Gmv gives, in every column of a 32-wide group, the masked mean-square
    # over that group's HID_MV channels (PGA invariant norm, e0-blades excluded).
    mask_col = np.tile(_NO_E0, HID_MV).astype(np.float32)            # (32,)
    Gmv = np.zeros((MV_OUT_W, MV_OUT_W), np.float32)
    blk = np.outer(mask_col, np.ones(MV_GROUP_W, np.float32)) / HID_MV
    for g in range(N_MV_GROUPS):
        Gmv[g * MV_GROUP_W:(g + 1) * MV_GROUP_W, g * MV_GROUP_W:(g + 1) * MV_GROUP_W] = blk
    # scalars: y_s @ Gs gives per-group means (LayerNorm groups of width HID_S).
    Gs = np.zeros((S_OUT_W, S_OUT_W), np.float32)
    for g in range(N_MV_GROUPS):
        Gs[g * S_GROUP_W:(g + 1) * S_GROUP_W, g * S_GROUP_W:(g + 1) * S_GROUP_W] = 1.0 / HID_S
    return jnp.asarray(Gmv), jnp.asarray(Gs)


def build_params(key):
    kq, kk, kv = jax.random.split(key, 3)
    ci_qk, si_qk = IN_MV + ADD_MV, IN_S + ADD_S
    pq = _init_equilinear(kq, ci_qk, si_qk, HID_MV * HEADS, HID_S * HEADS)
    pk = _init_equilinear(kk, ci_qk, si_qk, HID_MV, HID_S)
    pv = _init_equilinear(kv, IN_MV, IN_S, HID_MV, HID_S)
    basis = _pin_linear_basis()

    Wq, bq = _fold_equilinear(pq, ci_qk, si_qk, HID_MV * HEADS, HID_S * HEADS, basis)
    perm = _q_head_major_perm()
    Wq, bq = Wq[:, perm], bq[perm]
    Wk, bk = _fold_equilinear(pk, ci_qk, si_qk, HID_MV, HID_S, basis)
    Wv0, bv = _fold_equilinear(pv, IN_MV, IN_S, HID_MV, HID_S, basis)

    # v only sees the original (non-additional) mv / scalar channels: embed rows with zeros.
    d_in = ci_qk * 16 + si_qk
    Wv = jnp.zeros((d_in, Wv0.shape[1]), jnp.float32)
    Wv = Wv.at[: IN_MV * 16].set(Wv0[: IN_MV * 16])
    Wv = Wv.at[ci_qk * 16: ci_qk * 16 + IN_S].set(Wv0[IN_MV * 16:])

    co_q_mv = HID_MV * HEADS * 16   # 64
    co_mv = HID_MV * 16             # 32

    # output-column order: [q_mv | k_mv | v_mv || q_s | k_s | v_s]
    W_all = jnp.concatenate([Wq[:, :co_q_mv], Wk[:, :co_mv], Wv[:, :co_mv],
                             Wq[:, co_q_mv:], Wk[:, co_mv:], Wv[:, co_mv:]], axis=1)
    b_all = jnp.concatenate([bq[:co_q_mv], bk[:co_mv], bv[:co_mv],
                             bq[co_q_mv:], bk[co_mv:], bv[co_mv:]])

    d_mv_in = ci_qk * 16
    W_mm = W_all[:d_mv_in, :MV_OUT_W]
    W_sm = W_all[d_mv_in:, :MV_OUT_W]
    W_ms = W_all[:d_mv_in, MV_OUT_W:]
    W_ss = W_all[d_mv_in:, MV_OUT_W:]
    b_mv = b_all[None, :MV_OUT_W]
    b_s = b_all[None, MV_OUT_W:]
    Gmv, Gs = _build_norm_mats()
    kernel_params = (W_mm, W_sm, W_ms, W_ss, b_mv, b_s, Gmv, Gs)
    return (pq, pk, pv, basis), kernel_params


# ------------------------------- Pallas kernel -------------------------------
def _qkv_kernel(xmv_ref, xs_ref, wmm_ref, wsm_ref, wms_ref, wss_ref,
                bmv_ref, bs_ref, gmv_ref, gs_ref, ymv_ref, ys_ref):
    xmv = xmv_ref[...]
    xs = xs_ref[...]

    # fused q/k/v EquiLinear: two lane-dense output slabs
    y_mv = (jnp.dot(xmv, wmm_ref[...], precision=HIGH, preferred_element_type=jnp.float32)
            + jnp.dot(xs, wsm_ref[...], precision=HIGH, preferred_element_type=jnp.float32)
            + bmv_ref[...])                                           # (tile, 128)
    y_s = (jnp.dot(xmv, wms_ref[...], precision=HIGH, preferred_element_type=jnp.float32)
           + jnp.dot(xs, wss_ref[...], precision=HIGH, preferred_element_type=jnp.float32)
           + bs_ref[...])                                             # (tile, 16)

    # EquiLayerNorm per 32-col mv group (mask + channel-mean baked into Gmv; MXU reduce)
    sq = jnp.dot(y_mv * y_mv, gmv_ref[...], precision=HIGH,
                 preferred_element_type=jnp.float32)
    ymv_ref[...] = y_mv * jax.lax.rsqrt(sq + EPS_MV)

    # scalar LayerNorm per 4-col group (two-pass variance, group-mean via MXU)
    gs = gs_ref[...]
    mu = jnp.dot(y_s, gs, precision=HIGH, preferred_element_type=jnp.float32)
    cen = y_s - mu
    var = jnp.dot(cen * cen, gs, precision=HIGH, preferred_element_type=jnp.float32)
    ys_ref[...] = cen * jax.lax.rsqrt(var + EPS_S)


def _round_up(a, m):
    return ((a + m - 1) // m) * m


def _choose_tile_rows(n, requested):
    # keep >= ~4 grid steps when possible (v7x megacore), f32 sublane multiple of 8,
    # and never a tile (much) larger than the array itself.
    cap = _round_up(max(1, (n + 3) // 4), 8)
    return max(8, min(requested, cap, _round_up(n, 8)))


def multi_query_qkv(kernel_params, inputs, scalars,
                    additional_qk_features_mv=None, additional_qk_features_s=None,
                    tile_rows=1024):
    W_mm, W_sm, W_ms, W_ss, b_mv, b_s, Gmv, Gs = kernel_params
    qk_mv = inputs if additional_qk_features_mv is None else jnp.concatenate(
        [inputs, additional_qk_features_mv], axis=-2)
    qk_s = scalars if additional_qk_features_s is None else jnp.concatenate(
        [scalars, additional_qk_features_s], axis=-1)

    B, T = qk_mv.shape[0], qk_mv.shape[1]
    n = B * T
    d_mv = qk_mv.shape[-2] * MV_DIM
    d_s = qk_s.shape[-1]
    x_mv = qk_mv.reshape(n, d_mv).astype(jnp.float32)   # free reshape, no concat pass
    x_s = qk_s.reshape(n, d_s).astype(jnp.float32)

    tr = _choose_tile_rows(n, tile_rows)
    grid = (pl.cdiv(n, tr),)                            # partial last block handled by Pallas

    def row_spec(width):
        return pl.BlockSpec((tr, width), lambda i: (i, 0))

    def full_spec(a):
        return pl.BlockSpec(a.shape, lambda i: (0,) * a.ndim)

    y_mv, y_s = pl.pallas_call(
        _qkv_kernel,
        out_shape=(jax.ShapeDtypeStruct((n, MV_OUT_W), jnp.float32),
                   jax.ShapeDtypeStruct((n, S_OUT_W), jnp.float32)),
        grid_spec=pltpu.PrefetchScalarGridSpec(
            num_scalar_prefetch=0,
            grid=grid,
            in_specs=[row_spec(d_mv), row_spec(d_s),
                      full_spec(W_mm), full_spec(W_sm), full_spec(W_ms), full_spec(W_ss),
                      full_spec(b_mv), full_spec(b_s), full_spec(Gmv), full_spec(Gs)],
            out_specs=(row_spec(MV_OUT_W), row_spec(S_OUT_W)),
        ),
        compiler_params=pltpu.CompilerParams(dimension_semantics=("parallel",)),
    )(x_mv, x_s, W_mm, W_sm, W_ms, W_ss, b_mv, b_s, Gmv, Gs)

    # split the two lane-dense slabs back into q/k/v (cheap XLA slices/reshapes)
    # TODO(synk): fold the Q head transpose into the kernel out_specs (2-D grid over
    #             (B, T-tiles)) to save one HBM round-trip on the Q tensors.
    qw, kw = HEADS * HID_MV * MV_DIM, HID_MV * MV_DIM
    q_mv = y_mv[:, :qw].reshape(B, T, HEADS, HID_MV, MV_DIM).transpose(0, 2, 1, 3, 4)
    k_mv = y_mv[:, qw:qw + kw].reshape(B, T, HID_MV, MV_DIM)[:, None]
    v_mv = y_mv[:, qw + kw:].reshape(B, T, HID_MV, MV_DIM)[:, None]
    qsw, ksw = HEADS * HID_S, HID_S
    q_s = y_s[:, :qsw].reshape(B, T, HEADS, HID_S).transpose(0, 2, 1, 3)
    k_s = y_s[:, qsw:qsw + ksw].reshape(B, T, HID_S)[:, None]
    v_s = y_s[:, qsw + ksw:].reshape(B, T, HID_S)[:, None]
    return q_mv, k_mv, v_mv, q_s, k_s, v_s


# ------------------------- pure-JAX reference (torch semantics) -------------------------
def _reference(params, basis, inputs, scalars):
    pq, pk, pv = params
    basis_j = jnp.asarray(basis)
    mask16 = jnp.asarray(_NO_E0)

    def equilinear(mv, s, p):
        out_mv = jnp.einsum("yxa,aij,btxj->btyi", p["coeffs"], basis_j, mv, precision=HIGH)
        out_mv = out_mv.at[..., 0].add(
            jnp.einsum("bts,os->bto", s, p["s2mvs_w"], precision=HIGH) + p["s2mvs_b"])
        out_s = (jnp.einsum("btx,ox->bto", mv[..., 0], p["mvs2s_w"], precision=HIGH)
                 + p["mvs2s_b"]
                 + jnp.einsum("bts,os->bto", s, p["s2s_w"], precision=HIGH) + p["s2s_b"])
        return out_mv, out_s

    def equi_ln(x):  # channel dim = -2
        sq = jnp.sum(x * x * mask16, axis=-1, keepdims=True)
        sq = jnp.mean(sq, axis=-2, keepdims=True)
        return x / jnp.sqrt(sq + EPS_MV)

    def s_ln(x):
        mu = jnp.mean(x, axis=-1, keepdims=True)
        var = jnp.mean((x - mu) ** 2, axis=-1, keepdims=True)
        return (x - mu) / jnp.sqrt(var + EPS_S)

    q_mv, q_s = equilinear(inputs, scalars, pq)
    k_mv, k_s = equilinear(inputs, scalars, pk)
    v_mv, v_s = equilinear(inputs, scalars, pv)
    B, T = inputs.shape[0], inputs.shape[1]
    q_mv = q_mv.reshape(B, T, HID_MV, HEADS, 16).transpose(0, 3, 1, 2, 4)
    k_mv, v_mv = k_mv[:, None], v_mv[:, None]
    q_s = q_s.reshape(B, T, HID_S, HEADS).transpose(0, 3, 1, 2)
    k_s, v_s = k_s[:, None], v_s[:, None]
    return (equi_ln(q_mv), equi_ln(k_mv), equi_ln(v_mv),
            s_ln(q_s), s_ln(k_s), s_ln(v_s))


if __name__ == "__main__":
    key = jax.random.PRNGKey(0)
    kp, kx, ks = jax.random.split(key, 3)
    (pq, pk, pv, basis), kernel_params = build_params(kp)

    B, T = 2, 8
    inputs = jax.random.normal(kx, (B, T, IN_MV, MV_DIM), jnp.float32)
    scalars = jax.random.normal(ks, (B, T, IN_S), jnp.float32)

    outs = multi_query_qkv(kernel_params, inputs, scalars)
    outs = jax.block_until_ready(outs)

    refs = _reference((pq, pk, pv), basis, inputs, scalars)
    for o, r in zip(outs, refs):
        assert o.shape == r.shape, (o.shape, r.shape)
        np.testing.assert_allclose(np.asarray(o), np.asarray(r), rtol=1e-4, atol=1e-4)

    print("KERNEL_OK")
</pallas_src>

<mosaic_0001>
module attributes {stable_mosaic.version = 11 : i64} {
  func.func @_qkv_kernel(%arg0: i32, %arg1: memref<8x64xf32, #tpu.memory_space<vmem>>, %arg2: memref<8x8xf32, #tpu.memory_space<vmem>>, %arg3: memref<64x128xf32, #tpu.memory_space<vmem>>, %arg4: memref<8x128xf32, #tpu.memory_space<vmem>>, %arg5: memref<64x16xf32, #tpu.memory_space<vmem>>, %arg6: memref<8x16xf32, #tpu.memory_space<vmem>>, %arg7: memref<1x128xf32, #tpu.memory_space<vmem>>, %arg8: memref<1x16xf32, #tpu.memory_space<vmem>>, %arg9: memref<128x128xf32, #tpu.memory_space<vmem>>, %arg10: memref<16x16xf32, #tpu.memory_space<vmem>>, %arg11: memref<8x128xf32, #tpu.memory_space<vmem>>, %arg12: memref<8x16xf32, #tpu.memory_space<vmem>>) attributes {dimension_semantics = [#tpu.dimension_semantics<parallel>], iteration_bounds = array<i64: 2>, scalar_prefetch = 0 : i64, scratch_operands = 0 : i64, tpu.core_type = #tpu.core_type<tc>, window_params = [{transform_indices = @transform_0, window_bounds = array<i64: 8, 64>}, {transform_indices = @transform_1, window_bounds = array<i64: 8, 8>}, {pipeline_mode = #tpu.pipeline_mode<synchronous>, transform_indices = @transform_2, window_bounds = array<i64: 64, 128>}, {pipeline_mode = #tpu.pipeline_mode<synchronous>, transform_indices = @transform_3, window_bounds = array<i64: 8, 128>}, {pipeline_mode = #tpu.pipeline_mode<synchronous>, transform_indices = @transform_4, window_bounds = array<i64: 64, 16>}, {pipeline_mode = #tpu.pipeline_mode<synchronous>, transform_indices = @transform_5, window_bounds = array<i64: 8, 16>}, {pipeline_mode = #tpu.pipeline_mode<synchronous>, transform_indices = @transform_6, window_bounds = array<i64: 1, 128>}, {pipeline_mode = #tpu.pipeline_mode<synchronous>, transform_indices = @transform_7, window_bounds = array<i64: 1, 16>}, {pipeline_mode = #tpu.pipeline_mode<synchronous>, transform_indices = @transform_8, window_bounds = array<i64: 128, 128>}, {pipeline_mode = #tpu.pipeline_mode<synchronous>, transform_indices = @transform_9, window_bounds = array<i64: 16, 16>}, {transform_indices = @transform_10, window_bounds = array<i64: 8, 128>}, {transform_indices = @transform_11, window_bounds = array<i64: 8, 16>}]} {
    %c0 = arith.constant 0 : index
    %c0_0 = arith.constant 0 : index
    %0 = vector.load %arg1[%c0, %c0_0] : memref<8x64xf32, #tpu.memory_space<vmem>>, vector<8x64xf32>
    %c0_1 = arith.constant 0 : index
    %c0_2 = arith.constant 0 : index
    %1 = vector.load %arg2[%c0_1, %c0_2] : memref<8x8xf32, #tpu.memory_space<vmem>>, vector<8x8xf32>
    %c0_3 = arith.constant 0 : index
    %c0_4 = arith.constant 0 : index
    %2 = vector.load %arg3[%c0_3, %c0_4] : memref<64x128xf32, #tpu.memory_space<vmem>>, vector<64x128xf32>
    %cst = arith.constant dense<0.000000e+00> : vector<8x128xf32>
    %3 = tpu.matmul %0, %2, %cst {dimension_numbers = #tpu.dot_dimension_numbers<[1], [0], [0], [1], [0, 0, 1, 1], [], []>, precision = #tpu.contract_precision<fp32>} : vector<8x64xf32>, vector<64x128xf32>, vector<8x128xf32> -> vector<8x128xf32>
    %c0_5 = arith.constant 0 : index
    %c0_6 = arith.constant 0 : index
    %4 = vector.load %arg4[%c0_5, %c0_6] : memref<8x128xf32, #tpu.memory_space<vmem>>, vector<8x128xf32>
    %cst_7 = arith.constant dense<0.000000e+00> : vector<8x128xf32>
    %5 = tpu.matmul %1, %4, %cst_7 {dimension_numbers = #tpu.dot_dimension_numbers<[1], [0], [0], [1], [0, 0, 1, 1], [], []>, precision = #tpu.contract_precision<fp32>} : vector<8x8xf32>, vector<8x128xf32>, vector<8x128xf32> -> vector<8x128xf32>
    %6 = arith.addf %3, %5 : vector<8x128xf32>
    %c0_8 = arith.constant 0 : index
    %c0_9 = arith.constant 0 : index
    %7 = vector.load %arg7[%c0_8, %c0_9] : memref<1x128xf32, #tpu.memory_space<vmem>>, vector<1x128xf32>
    %8 = vector.broadcast %7 : vector<1x128xf32> to vector<8x128xf32>
    %9 = arith.addf %6, %8 : vector<8x128xf32>
    %c0_10 = arith.constant 0 : index
    %c0_11 = arith.constant 0 : index
    %10 = vector.load %arg5[%c0_10, %c0_11] : memref<64x16xf32, #tpu.memory_space<vmem>>, vector<64x16xf32>
    %cst_12 = arith.constant dense<0.000000e+00> : vector<8x16xf32>
    %11 = tpu.matmul %0, %10, %cst_12 {dimension_numbers = #tpu.dot_dimension_numbers<[1], [0], [0], [1], [0, 0, 1, 1], [], []>, precision = #tpu.contract_precision<fp32>} : vector<8x64xf32>, vector<64x16xf32>, vector<8x16xf32> -> vector<8x16xf32>
    %c0_13 = arith.constant 0 : index
    %c0_14 = arith.constant 0 : index
    %12 = vector.load %arg6[%c0_13, %c0_14] : memref<8x16xf32, #tpu.memory_space<vmem>>, vector<8x16xf32>
    %cst_15 = arith.constant dense<0.000000e+00> : vector<8x16xf32>
    %13 = tpu.matmul %1, %12, %cst_15 {dimension_numbers = #tpu.dot_dimension_numbers<[1], [0], [0], [1], [0, 0, 1, 1], [], []>, precision = #tpu.contract_precision<fp32>} : vector<8x8xf32>, vector<8x16xf32>, vector<8x16xf32> -> vector<8x16xf32>
    %14 = arith.addf %11, %13 : vector<8x16xf32>
    %c0_16 = arith.constant 0 : index
    %c0_17 = arith.constant 0 : index
    %15 = vector.load %arg8[%c0_16, %c0_17] : memref<1x16xf32, #tpu.memory_space<vmem>>, vector<1x16xf32>
    %16 = vector.broadcast %15 : vector<1x16xf32> to vector<8x16xf32>
    %17 = arith.addf %14, %16 : vector<8x16xf32>
    %18 = arith.mulf %9, %9 : vector<8x128xf32>
    %c0_18 = arith.constant 0 : index
    %c0_19 = arith.constant 0 : index
    %19 = vector.load %arg9[%c0_18, %c0_19] : memref<128x128xf32, #tpu.memory_space<vmem>>, vector<128x128xf32>
    %cst_20 = arith.constant dense<0.000000e+00> : vector<8x128xf32>
    %20 = tpu.matmul %18, %19, %cst_20 {dimension_numbers = #tpu.dot_dimension_numbers<[1], [0], [0], [1], [0, 0, 1, 1], [], []>, precision = #tpu.contract_precision<fp32>} : vector<8x128xf32>, vector<128x128xf32>, vector<8x128xf32> -> vector<8x128xf32>
    %cst_21 = arith.constant 0.00999999977 : f32
    %21 = vector.broadcast %cst_21 : f32 to vector<8x128xf32>
    %22 = arith.addf %20, %21 : vector<8x128xf32>
    %23 = math.rsqrt %22 : vector<8x128xf32>
    %24 = arith.mulf %9, %23 : vector<8x128xf32>
    %c0_22 = arith.constant 0 : index
    %c0_23 = arith.constant 0 : index
    %25 = vector.load %arg11[%c0_22, %c0_23] : memref<8x128xf32, #tpu.memory_space<vmem>>, vector<8x128xf32>
    tpu.vector_store %arg11[%c0_22, %c0_23], %24 {strides = array<i32>} : memref<8x128xf32, #tpu.memory_space<vmem>>, vector<8x128xf32>,
    %c0_24 = arith.constant 0 : index
    %c0_25 = arith.constant 0 : index
    %26 = vector.load %arg10[%c0_24, %c0_25] : memref<16x16xf32, #tpu.memory_space<vmem>>, vector<16x16xf32>
    %cst_26 = arith.constant dense<0.000000e+00> : vector<8x16xf32>
    %27 = tpu.matmul %17, %26, %cst_26 {dimension_numbers = #tpu.dot_dimension_numbers<[1], [0], [0], [1], [0, 0, 1, 1], [], []>, precision = #tpu.contract_precision<fp32>} : vector<8x16xf32>, vector<16x16xf32>, vector<8x16xf32> -> vector<8x16xf32>
    %28 = arith.subf %17, %27 : vector<8x16xf32>
    %29 = arith.mulf %28, %28 : vector<8x16xf32>
    %cst_27 = arith.constant dense<0.000000e+00> : vector<8x16xf32>
    %30 = tpu.matmul %29, %26, %cst_27 {dimension_numbers = #tpu.dot_dimension_numbers<[1], [0], [0], [1], [0, 0, 1, 1], [], []>, precision = #tpu.contract_precision<fp32>} : vector<8x16xf32>, vector<16x16xf32>, vector<8x16xf32> -> vector<8x16xf32>
    %cst_28 = arith.constant 9.99999974E-6 : f32
    %31 = vector.broadcast %cst_28 : f32 to vector<8x16xf32>
    %32 = arith.addf %30, %31 : vector<8x16xf32>
    %33 = math.rsqrt %32 : vector<8x16xf32>
    %34 = arith.mulf %28, %33 : vector<8x16xf32>
    %c0_29 = arith.constant 0 : index
    %c0_30 = arith.constant 0 : index
    %35 = vector.load %arg12[%c0_29, %c0_30] : memref<8x16xf32, #tpu.memory_space<vmem>>, vector<8x16xf32>
    tpu.vector_store %arg12[%c0_29, %c0_30], %34 {strides = array<i32>} : memref<8x16xf32, #tpu.memory_space<vmem>>, vector<8x16xf32>,
    return
  }
  func.func @transform_0(%arg0: i32) -> (i32, i32) {
    %c0_i32 = arith.constant 0 : i32
    %c0_i32_0 = arith.constant 0 : i32
    return %arg0, %c0_i32 : i32, i32
  }
  func.func @transform_1(%arg0: i32) -> (i32, i32) {
    %c0_i32 = arith.constant 0 : i32
    %c0_i32_0 = arith.constant 0 : i32
    return %arg0, %c0_i32 : i32, i32
  }
  func.func @transform_2(%arg0: i32) -> (i32, i32) {
    %c0_i32 = arith.constant 0 : i32
    %c0_i32_0 = arith.constant 0 : i32
    %c0_i32_1 = arith.constant 0 : i32
    return %c0_i32, %c0_i32_0 : i32, i32
  }
  func.func @transform_3(%arg0: i32) -> (i32, i32) {
    %c0_i32 = arith.constant 0 : i32
    %c0_i32_0 = arith.constant 0 : i32
    %c0_i32_1 = arith.constant 0 : i32
    return %c0_i32, %c0_i32_0 : i32, i32
  }
  func.func @transform_4(%arg0: i32) -> (i32, i32) {
    %c0_i32 = arith.constant 0 : i32
    %c0_i32_0 = arith.constant 0 : i32
    %c0_i32_1 = arith.constant 0 : i32
    return %c0_i32, %c0_i32_0 : i32, i32
  }
  func.func @transform_5(%arg0: i32) -> (i32, i32) {
    %c0_i32 = arith.constant 0 : i32
    %c0_i32_0 = arith.constant 0 : i32
    %c0_i32_1 = arith.constant 0 : i32
    return %c0_i32, %c0_i32_0 : i32, i32
  }
  func.func @transform_6(%arg0: i32) -> (i32, i32) {
    %c0_i32 = arith.constant 0 : i32
    %c0_i32_0 = arith.constant 0 : i32
    %c0_i32_1 = arith.constant 0 : i32
    return %c0_i32, %c0_i32_0 : i32, i32
  }
  func.func @transform_7(%arg0: i32) -> (i32, i32) {
    %c0_i32 = arith.constant 0 : i32
    %c0_i32_0 = arith.constant 0 : i32
    %c0_i32_1 = arith.constant 0 : i32
    return %c0_i32, %c0_i32_0 : i32, i32
  }
  func.func @transform_8(%arg0: i32) -> (i32, i32) {
    %c0_i32 = arith.constant 0 : i32
    %c0_i32_0 = arith.constant 0 : i32
    %c0_i32_1 = arith.constant 0 : i32
    return %c0_i32, %c0_i32_0 : i32, i32
  }
  func.func @transform_9(%arg0: i32) -> (i32, i32) {
    %c0_i32 = arith.constant 0 : i32
    %c0_i32_0 = arith.constant 0 : i32
    %c0_i32_1 = arith.constant 0 : i32
    return %c0_i32, %c0_i32_0 : i32, i32
  }
  func.func @transform_10(%arg0: i32) -> (i32, i32) {
    %c0_i32 = arith.constant 0 : i32
    %c0_i32_0 = arith.constant 0 : i32
    return %arg0, %c0_i32 : i32, i32
  }
  func.func @transform_11(%arg0: i32) -> (i32, i32) {
    %c0_i32 = arith.constant 0 : i32
    %c0_i32_0 = arith.constant 0 : i32
    return %arg0, %c0_i32 : i32, i32
  }
}

</mosaic_0001>

<llo_original>
// kernel: tpu_custom_call.1
$region0: #{tpu_custom_call.1}
  #allocation0 [shape = 'u32[]', space=smem, size = 0x4, offset = 0x4, fixed_abs, tag = 'smem constant byte address 0x4 - core index']
  #allocation1 [shape = 'u32[72,128]{1,0:T(1,128)}', space=vmem, size = 0x9000, scoped, tag = 'internal scratch']
  %s0 = inlined_call_operand.vmem [shape: f32[16,64], index: 0, kind: input, shape index: {}]
  %s1 = inlined_call_operand.vmem [shape: f32[16,8], index: 1, kind: input, shape index: {}]
  %s2 = inlined_call_operand.vmem [shape: f32[64,128], index: 2, kind: input, shape index: {}]
  %s3 = inlined_call_operand.vmem [shape: f32[8,128], index: 3, kind: input, shape index: {}]
  %s4 = inlined_call_operand.vmem [shape: f32[64,16], index: 4, kind: input, shape index: {}]
  %s5 = inlined_call_operand.hbm [shape: f32[8,16], index: 5, kind: input, shape index: {}]
  %s6 = inlined_call_operand.vmem [shape: f32[1,128], index: 6, kind: input, shape index: {}]
  %s7 = inlined_call_operand.vmem [shape: f32[1,16], index: 7, kind: input, shape index: {}]
  %s8 = inlined_call_operand.hbm [shape: f32[128,128], index: 8, kind: input, shape index: {}]
  %s9 = inlined_call_operand.hbm [shape: f32[16,16], index: 9, kind: input, shape index: {}]
  %s10 = inlined_call_operand.hbm [shape: f32[16,128], index: 10, kind: output, shape index: {0}]
  %s11 = inlined_call_operand.hbm [shape: f32[16,16], index: 11, kind: output, shape index: {1}]
  %12 = xla_tuple %s10, %s11
  %s13 = sld [smem:[#allocation0]]
  $region93: #{tpu_custom_call.1} parent=0
    _
  %s15 = ssub.s32 1, %s13
  %s16 = scalar_select 0, %s15, %s13
  $region1: #{tpu_custom_call.1} parent=0
    #allocation2 [shape = 'u8[4096]{0}', space=vmem, size = 0x1000, scoped, tag = 'input window, operand 5, single buffered']
    #allocation3 [shape = 's32[2]{0}', space=sflag, size = 0x8, scoped, tag = 'scoped memory for tpu_custom_call.1']
    #allocation4 [shape = 's32[2]{0}', space=sflag, size = 0x8, scoped, tag = 'scoped memory for tpu_custom_call.1']
    #allocation5 [shape = 'u8[65536]{0}', space=vmem, size = 0x10000, scoped, tag = 'input window, operand 8, single buffered']
    #allocation6 [shape = 's32[1]{0}', space=sflag, size = 0x4, scoped, tag = 'scoped memory for tpu_custom_call.1']
    #allocation7 [shape = 'u8[8192]{0}', space=vmem, size = 0x2000, scoped, tag = 'input window, operand 9, single buffered']
    #allocation8 [shape = 'u8[8192]{0}', space=vmem, size = 0x2000, scoped, tag = 'output window, operand 0']
    #allocation9 [shape = 'u8[8192]{0}', space=vmem, size = 0x2000, scoped, tag = 'output window, operand 1']
    #allocation10 [shape = 's32[2]{0}', space=sflag, size = 0x8, scoped, tag = 'scoped memory for tpu_custom_call.1']
    %17 = vsyncpa [#allocation3], 0
    %18 = vsyncpa [#allocation6], 0
    %19 = vsyncpa [#allocation4], 0
    %s20 = scalar_lea.sflag [#allocation4], 1
    %21 = vsyncpa %s20, 0
    %22 = vsyncpa [#allocation10], 0
    %s23 = scalar_lea.sflag [#allocation10], 1
    %24 = vsyncpa %s23, 0
    loop: start=0, step=1, limit=4
    $region2: #{tpu_custom_call.1} parent=1 // loop_pre_header
      _
    $region3: #{tpu_custom_call.1} parent=1 // loop_header
      %s26 = sphi 0, %s30
      %p27 = scmp.ge.s32.totalorder %s26, 4
      %s36 = sphi 0, %s38
      %s39 = sphi 0, %s36
      %s40 = sphi 0, %s39
      %s56 = sphi 0, %s40
      %s62 = sphi 0, %s64
      %s65 = sphi 0, %s62
      %s66 = sphi 0, %s65
      %s82 = sphi 0, %s66
      %s86 = sphi 0, %s86
      %s88 = sphi 0, %s86
      %s89 = sphi 0, %s88
      %s103 = sphi 0, %s89
      %s107 = sphi 0, %s107
      %s109 = sphi 0, %s107
      %s110 = sphi 0, %s109
      %s124 = sphi 0, %s110
      %s128 = sphi 0, %s128
      %s130 = sphi 0, %s128
      %s131 = sphi 0, %s130
      %s145 = sphi 0, %s131
      %s149 = sphi 0, %s149
      %s151 = sphi 0, %s149
      %s152 = sphi 0, %s151
      %s166 = sphi 0, %s152
      %s170 = sphi 0, %s170
      %s172 = sphi 0, %s170
      %s173 = sphi 0, %s172
      %s187 = sphi 0, %s173
      %s191 = sphi 0, %s191
      %s193 = sphi 0, %s191
      %s194 = sphi 0, %s193
      %s208 = sphi 0, %s194
      %s212 = sphi 0, %s212
      %s214 = sphi 0, %s212
      %s215 = sphi 0, %s214
      %s229 = sphi 0, %s215
      %s233 = sphi 0, %s233
      %s235 = sphi 0, %s233
      %s236 = sphi 0, %s235
      %s250 = sphi 0, %s236
      %s256 = sphi 0, %s258
      %s259 = sphi 0, %s256
      %s260 = sphi 0, %s259
      %s276 = sphi 0, %s260
      %s282 = sphi 0, %s284
      %s285 = sphi 0, %s282
      %s286 = sphi 0, %s285
      %s302 = sphi 0, %s286
    $region4: #{tpu_custom_call.1} parent=1 // loop_header_branch
      %29 = sbr.rel (%p27) target = $region8
    $region5: #{tpu_custom_call.1} parent=1 // loop_body
      %s31 = ssub.s32 %s26, 1
      %s32 = ssub.s32 %s26, 2
      %s33 = sadd.s32 %s26, 1
      %s34 = ssub.s32 %s26, %s33
      %p35 = scmp.eq.s32.totalorder %s34, 0
      %s37 = sadd.s32 %s36, 1
      %s38 = scalar_select %p35, %s36, %s37
      %p41 = pneg %p35
      %p42 = scmp.eq.s32.totalorder %s26, 1
      %p43 = por %p41, %p42
      %p44 = scmp.ne.s32.totalorder %s36, %s39
      %p45 = scmp.eq.s32.totalorder %s26, 0
      %p46 = por %p44, %p45
      %p47 = scmp.ne.s32.totalorder %s36, %s39
      %p48 = scmp.eq.s32.totalorder %s31, 1
      %p49 = por %p47, %p48
      %p50 = scmp.ne.s32.totalorder %s39, %s40
      %p51 = scmp.eq.s32.totalorder %s31, 0
      %p52 = por %p50, %p51
      %p53 = scmp.ne.s32.totalorder %s39, %s40
      %p54 = scmp.eq.s32.totalorder %s32, 1
      %p55 = por %p53, %p54
      %p57 = scmp.ne.s32.totalorder %s40, %s56
      %p58 = scmp.eq.s32.totalorder %s32, 0
      %p59 = por %p57, %p58
      %s60 = ssub.s32 %s26, %s33
      %p61 = scmp.eq.s32.totalorder %s60, 0
      %s63 = sadd.s32 %s62, 1
      %s64 = scalar_select %p61, %s62, %s63
      %p67 = pneg %p61
      %p68 = scmp.eq.s32.totalorder %s26, 1
      %p69 = por %p67, %p68
      %p70 = scmp.ne.s32.totalorder %s62, %s65
      %p71 = scmp.eq.s32.totalorder %s26, 0
      %p72 = por %p70, %p71
      %p73 = scmp.ne.s32.totalorder %s62, %s65
      %p74 = scmp.eq.s32.totalorder %s31, 1
      %p75 = por %p73, %p74
      %p76 = scmp.ne.s32.totalorder %s65, %s66
      %p77 = scmp.eq.s32.totalorder %s31, 0
      %p78 = por %p76, %p77
      %p79 = scmp.ne.s32.totalorder %s65, %s66
      %p80 = scmp.eq.s32.totalorder %s32, 1
      %p81 = por %p79, %p80
      %p83 = scmp.ne.s32.totalorder %s66, %s82
      %p84 = scmp.eq.s32.totalorder %s32, 0
      %p85 = por %p83, %p84
      %s87 = sadd.s32 %s86, 1
      %p90 = scmp.eq.s32.totalorder %s26, 1
      %p91 = scmp.ne.s32.totalorder %s86, %s88
      %p92 = scmp.eq.s32.totalorder %s26, 0
      %p93 = por %p91, %p92
      %p94 = scmp.ne.s32.totalorder %s86, %s88
      %p95 = scmp.eq.s32.totalorder %s31, 1
      %p96 = por %p94, %p95
      %p97 = scmp.ne.s32.totalorder %s88, %s89
      %p98 = scmp.eq.s32.totalorder %s31, 0
      %p99 = por %p97, %p98
      %p100 = scmp.ne.s32.totalorder %s88, %s89
      %p101 = scmp.eq.s32.totalorder %s32, 1
      %p102 = por %p100, %p101
      %p104 = scmp.ne.s32.totalorder %s89, %s103
      %p105 = scmp.eq.s32.totalorder %s32, 0
      %p106 = por %p104, %p105
      %s108 = sadd.s32 %s107, 1
      %p111 = scmp.eq.s32.totalorder %s26, 1
      %p112 = scmp.ne.s32.totalorder %s107, %s109
      %p113 = scmp.eq.s32.totalorder %s26, 0
      %p114 = por %p112, %p113
      %p115 = scmp.ne.s32.totalorder %s107, %s109
      %p116 = scmp.eq.s32.totalorder %s31, 1
      %p117 = por %p115, %p116
      %p118 = scmp.ne.s32.totalorder %s109, %s110
      %p119 = scmp.eq.s32.totalorder %s31, 0
      %p120 = por %p118, %p119
      %p121 = scmp.ne.s32.totalorder %s109, %s110
      %p122 = scmp.eq.s32.totalorder %s32, 1
      %p123 = por %p121, %p122
      %p125 = scmp.ne.s32.totalorder %s110, %s124
      %p126 = scmp.eq.s32.totalorder %s32, 0
      %p127 = por %p125, %p126
      %s129 = sadd.s32 %s128, 1
      %p132 = scmp.eq.s32.totalorder %s26, 1
      %p133 = scmp.ne.s32.totalorder %s128, %s130
      %p134 = scmp.eq.s32.totalorder %s26, 0
      %p135 = por %p133, %p134
      %p136 = scmp.ne.s32.totalorder %s128, %s130
      %p137 = scmp.eq.s32.totalorder %s31, 1
      %p138 = por %p136, %p137
      %p139 = scmp.ne.s32.totalorder %s130, %s131
      %p140 = scmp.eq.s32.totalorder %s31, 0
      %p141 = por %p139, %p140
      %p142 = scmp.ne.s32.totalorder %s130, %s131
      %p143 = scmp.eq.s32.totalorder %s32, 1
      %p144 = por %p142, %p143
      %p146 = scmp.ne.s32.totalorder %s131, %s145
      %p147 = scmp.eq.s32.totalorder %s32, 0
      %p148 = por %p146, %p147
      %s150 = sadd.s32 %s149, 1
      %p153 = scmp.eq.s32.totalorder %s26, 1
      %p154 = scmp.ne.s32.totalorder %s149, %s151
      %p155 = scmp.eq.s32.totalorder %s26, 0
      %p156 = por %p154, %p155
      %p157 = scmp.ne.s32.totalorder %s149, %s151
      %p158 = scmp.eq.s32.totalorder %s31, 1
      %p159 = por %p157, %p158
      %p160 = scmp.ne.s32.totalorder %s151, %s152
      %p161 = scmp.eq.s32.totalorder %s31, 0
      %p162 = por %p160, %p161
      %p163 = scmp.ne.s32.totalorder %s151, %s152
      %p164 = scmp.eq.s32.totalorder %s32, 1
      %p165 = por %p163, %p164
      %p167 = scmp.ne.s32.totalorder %s152, %s166
      %p168 = scmp.eq.s32.totalorder %s32, 0
      %p169 = por %p167, %p168
      %s171 = sadd.s32 %s170, 1
      %p174 = scmp.eq.s32.totalorder %s26, 1
      %p175 = scmp.ne.s32.totalorder %s170, %s172
      %p176 = scmp.eq.s32.totalorder %s26, 0
      %p177 = por %p175, %p176
      %p178 = scmp.ne.s32.totalorder %s170, %s172
      %p179 = scmp.eq.s32.totalorder %s31, 1
      %p180 = por %p178, %p179
      %p181 = scmp.ne.s32.totalorder %s172, %s173
      %p182 = scmp.eq.s32.totalorder %s31, 0
      %p183 = por %p181, %p182
      %p184 = scmp.ne.s32.totalorder %s172, %s173
      %p185 = scmp.eq.s32.totalorder %s32, 1
      %p186 = por %p184, %p185
      %p188 = scmp.ne.s32.totalorder %s173, %s187
      %p189 = scmp.eq.s32.totalorder %s32, 0
      %p190 = por %p188, %p189
      %s192 = sadd.s32 %s191, 1
      %p195 = scmp.eq.s32.totalorder %s26, 1
      %p196 = scmp.ne.s32.totalorder %s191, %s193
      %p197 = scmp.eq.s32.totalorder %s26, 0
      %p198 = por %p196, %p197
      %p199 = scmp.ne.s32.totalorder %s191, %s193
      %p200 = scmp.eq.s32.totalorder %s31, 1
      %p201 = por %p199, %p200
      %p202 = scmp.ne.s32.totalorder %s193, %s194
      %p203 = scmp.eq.s32.totalorder %s31, 0
      %p204 = por %p202, %p203
      %p205 = scmp.ne.s32.totalorder %s193, %s194
      %p206 = scmp.eq.s32.totalorder %s32, 1
      %p207 = por %p205, %p206
      %p209 = scmp.ne.s32.totalorder %s194, %s208
      %p210 = scmp.eq.s32.totalorder %s32, 0
      %p211 = por %p209, %p210
      %s213 = sadd.s32 %s212, 1
      %p216 = scmp.eq.s32.totalorder %s26, 1
      %p217 = scmp.ne.s32.totalorder %s212, %s214
      %p218 = scmp.eq.s32.totalorder %s26, 0
      %p219 = por %p217, %p218
      %p220 = scmp.ne.s32.totalorder %s212, %s214
      %p221 = scmp.eq.s32.totalorder %s31, 1
      %p222 = por %p220, %p221
      %p223 = scmp.ne.s32.totalorder %s214, %s215
      %p224 = scmp.eq.s32.totalorder %s31, 0
      %p225 = por %p223, %p224
      %p226 = scmp.ne.s32.totalorder %s214, %s215
      %p227 = scmp.eq.s32.totalorder %s32, 1
      %p228 = por %p226, %p227
      %p230 = scmp.ne.s32.totalorder %s215, %s229
      %p231 = scmp.eq.s32.totalorder %s32, 0
      %p232 = por %p230, %p231
      %s234 = sadd.s32 %s233, 1
      %p237 = scmp.eq.s32.totalorder %s26, 1
      %p238 = scmp.ne.s32.totalorder %s233, %s235
      %p239 = scmp.eq.s32.totalorder %s26, 0
      %p240 = por %p238, %p239
      %p241 = scmp.ne.s32.totalorder %s233, %s235
      %p242 = scmp.eq.s32.totalorder %s31, 1
      %p243 = por %p241, %p242
      %p244 = scmp.ne.s32.totalorder %s235, %s236
      %p245 = scmp.eq.s32.totalorder %s31, 0
      %p246 = por %p244, %p245
      %p247 = scmp.ne.s32.totalorder %s235, %s236
      %p248 = scmp.eq.s32.totalorder %s32, 1
      %p249 = por %p247, %p248
      %p251 = scmp.ne.s32.totalorder %s236, %s250
      %p252 = scmp.eq.s32.totalorder %s32, 0
      %p253 = por %p251, %p252
      %s254 = ssub.s32 %s26, %s33
      %p255 = scmp.eq.s32.totalorder %s254, 0
      %s257 = sadd.s32 %s256, 1
      %s258 = scalar_select %p255, %s256, %s257
      %p261 = pneg %p255
      %p262 = scmp.eq.s32.totalorder %s26, 1
      %p263 = por %p261, %p262
      %p264 = scmp.ne.s32.totalorder %s256, %s259
      %p265 = scmp.eq.s32.totalorder %s26, 0
      %p266 = por %p264, %p265
      %p267 = scmp.ne.s32.totalorder %s256, %s259
      %p268 = scmp.eq.s32.totalorder %s31, 1
      %p269 = por %p267, %p268
      %p270 = scmp.ne.s32.totalorder %s259, %s260
      %p271 = scmp.eq.s32.totalorder %s31, 0
      %p272 = por %p270, %p271
      %p273 = scmp.ne.s32.totalorder %s259, %s260
      %p274 = scmp.eq.s32.totalorder %s32, 1
      %p275 = por %p273, %p274
      %p277 = scmp.ne.s32.totalorder %s260, %s276
      %p278 = scmp.eq.s32.totalorder %s32, 0
      %p279 = por %p277, %p278
      %s280 = ssub.s32 %s26, %s33
      %p281 = scmp.eq.s32.totalorder %s280, 0
      %s283 = sadd.s32 %s282, 1
      %s284 = scalar_select %p281, %s282, %s283
      %p287 = pneg %p281
      %p288 = scmp.eq.s32.totalorder %s26, 1
      %p289 = por %p287, %p288
      %p290 = scmp.ne.s32.totalorder %s282, %s285
      %p291 = scmp.eq.s32.totalorder %s26, 0
      %p292 = por %p290, %p291
      %p293 = scmp.ne.s32.totalorder %s282, %s285
      %p294 = scmp.eq.s32.totalorder %s31, 1
      %p295 = por %p293, %p294
      %p296 = scmp.ne.s32.totalorder %s285, %s286
      %p297 = scmp.eq.s32.totalorder %s31, 0
      %p298 = por %p296, %p297
      %p299 = scmp.ne.s32.totalorder %s285, %s286
      %p300 = scmp.eq.s32.totalorder %s32, 1
      %p301 = por %p299, %p300
      %p303 = scmp.ne.s32.totalorder %s286, %s302
      %p304 = scmp.eq.s32.totalorder %s32, 0
      %p305 = por %p303, %p304
      %p306 = scmp.le.s32.totalorder 1, %s26
      %p307 = scmp.lt.s32.totalorder %s26, 3
      %p308 = pnand %p306, %p307
      %p309 = pneg %p308
      // Predicated region
      $region9: #{tpu_custom_call.1} parent=5 // pred_check
        _
      $region10: #{tpu_custom_call.1} parent=5 // pred_check_branch
        %311 = sbr.rel (%p308) target = $region12
      $region11: #{tpu_custom_call.1} parent=5 // pred_region
        %s312 = ssub.s32 %s26, 1
        // Predicated region
        $region13: #{tpu_custom_call.1} parent=11 // pred_check
          %p313 = pneg %p99
        $region14: #{tpu_custom_call.1} parent=11 // pred_check_branch
          %315 = sbr.rel (%p313) target = $region16
        $region15: #{tpu_custom_call.1} parent=11 // pred_region
          _
        $region16: #{tpu_custom_call.1} parent=11 // pred_fallthru
          _
        // Predicated region
        $region17: #{tpu_custom_call.1} parent=11 // pred_check
          %p316 = pneg %p120
        $region18: #{tpu_custom_call.1} parent=11 // pred_check_branch
          %318 = sbr.rel (%p316) target = $region20
        $region19: #{tpu_custom_call.1} parent=11 // pred_region
          _
        $region20: #{tpu_custom_call.1} parent=11 // pred_fallthru
          _
        // Predicated region
        $region21: #{tpu_custom_call.1} parent=11 // pred_check
          %p319 = pneg %p141
        $region22: #{tpu_custom_call.1} parent=11 // pred_check_branch
          %321 = sbr.rel (%p319) target = $region24
        $region23: #{tpu_custom_call.1} parent=11 // pred_region
          _
        $region24: #{tpu_custom_call.1} parent=11 // pred_fallthru
          _
        // Predicated region
        $region25: #{tpu_custom_call.1} parent=11 // pred_check
          %p322 = pneg %p162
        $region26: #{tpu_custom_call.1} parent=11 // pred_check_branch
          %324 = sbr.rel (%p322) target = $region28
        $region27: #{tpu_custom_call.1} parent=11 // pred_region
          %326 = vsyncadd [#allocation3], 0
          %s328 = sshll.u32 %s5, 4
          %s329 = int_to_ptr.hbm [resolvable:$true] %s328
          %s330 = sshll.u32 [#allocation2], 4
          %s331 = int_to_ptr.vmem [resolvable:$true] %s330
          %333 = dma.hbm_to_vmem [thread:$0]  %s329, 128, %s331, [#allocation3]
        $region28: #{tpu_custom_call.1} parent=11 // pred_fallthru
          _
        // Predicated region
        $region29: #{tpu_custom_call.1} parent=11 // pred_check
          %p334 = pneg %p183
        $region30: #{tpu_custom_call.1} parent=11 // pred_check_branch
          %336 = sbr.rel (%p334) target = $region32
        $region31: #{tpu_custom_call.1} parent=11 // pred_region
          _
        $region32: #{tpu_custom_call.1} parent=11 // pred_fallthru
          _
        // Predicated region
        $region33: #{tpu_custom_call.1} parent=11 // pred_check
          %p337 = pneg %p204
        $region34: #{tpu_custom_call.1} parent=11 // pred_check_branch
          %339 = sbr.rel (%p337) target = $region36
        $region35: #{tpu_custom_call.1} parent=11 // pred_region
          _
        $region36: #{tpu_custom_call.1} parent=11 // pred_fallthru
          _
        // Predicated region
        $region37: #{tpu_custom_call.1} parent=11 // pred_check
          %p340 = pneg %p225
        $region38: #{tpu_custom_call.1} parent=11 // pred_check_branch
          %342 = sbr.rel (%p340) target = $region40
        $region39: #{tpu_custom_call.1} parent=11 // pred_region
          %344 = vsyncadd [#allocation6], 0
          %s345 = sshll.u32 %s8, 4
          %s346 = int_to_ptr.hbm [resolvable:$true] %s345
          %s347 = sshll.u32 [#allocation5], 4
          %s348 = int_to_ptr.vmem [resolvable:$true] %s347
          %353 = dma.hbm_to_vmem [thread:$0]  %s346, 2048, %s348, [#allocation6], 128, 128, 8
        $region40: #{tpu_custom_call.1} parent=11 // pred_fallthru
          _
        // Predicated region
        $region41: #{tpu_custom_call.1} parent=11 // pred_check
          %p354 = pneg %p246
        $region42: #{tpu_custom_call.1} parent=11 // pred_check_branch
          %356 = sbr.rel (%p354) target = $region44
        $region43: #{tpu_custom_call.1} parent=11 // pred_region
          %358 = vsyncadd [#allocation6], 0
          %s359 = sshll.u32 %s9, 4
          %s360 = int_to_ptr.hbm [resolvable:$true] %s359
          %s361 = sshll.u32 [#allocation7], 4
          %s362 = int_to_ptr.vmem [resolvable:$true] %s361
          %367 = dma.hbm_to_vmem [thread:$0]  %s360, 256, %s362, [#allocation6], 128, 128, 8
        $region44: #{tpu_custom_call.1} parent=11 // pred_fallthru
          _
      $region12: #{tpu_custom_call.1} parent=5 // pred_fallthru
        _
      %p368 = scmp.lt.s32.totalorder %s26, 2
      // Predicated region
      $region45: #{tpu_custom_call.1} parent=5 // pred_check
        %p369 = pneg %p368
      $region46: #{tpu_custom_call.1} parent=5 // pred_check_branch
        %371 = sbr.rel (%p369) target = $region48
      $region47: #{tpu_custom_call.1} parent=5 // pred_region
        // Predicated region
        $region49: #{tpu_custom_call.1} parent=47 // pred_check
          %p372 = pneg %p46
        $region50: #{tpu_custom_call.1} parent=47 // pred_check_branch
          %374 = sbr.rel (%p372) target = $region52
        $region51: #{tpu_custom_call.1} parent=47 // pred_region
          %p375 = scmp.lt.s32.totalorder %s26, 1
          %s376 = scalar_select %p375, %s26, 1
          %s377 = smul.addr %s376, 8
          %s378 = scalar_lea.vmem %s0, %s377
        $region52: #{tpu_custom_call.1} parent=47 // pred_fallthru
          _
        // Predicated region
        $region53: #{tpu_custom_call.1} parent=47 // pred_check
          %p379 = pneg %p72
        $region54: #{tpu_custom_call.1} parent=47 // pred_check_branch
          %381 = sbr.rel (%p379) target = $region56
        $region55: #{tpu_custom_call.1} parent=47 // pred_region
          %p382 = scmp.lt.s32.totalorder %s26, 1
          %s383 = scalar_select %p382, %s26, 1
          %s384 = smul.addr %s383, 8
          %s385 = scalar_lea.vmem %s1, %s384
        $region56: #{tpu_custom_call.1} parent=47 // pred_fallthru
          _
      $region48: #{tpu_custom_call.1} parent=5 // pred_fallthru
        _
      %p386 = scmp.le.s32.totalorder 1, %s26
      %p387 = scmp.lt.s32.totalorder %s26, 3
      %p388 = pnand %p386, %p387
      %p389 = pneg %p388
      // Predicated region
      $region57: #{tpu_custom_call.1} parent=5 // pred_check
        _
      $region58: #{tpu_custom_call.1} parent=5 // pred_check_branch
        %391 = sbr.rel (%p388) target = $region60
      $region59: #{tpu_custom_call.1} parent=5 // pred_region
        %s392 = ssub.s32 %s26, 1
        // Predicated region
        $region61: #{tpu_custom_call.1} parent=59 // pred_check
          %p393 = pneg %p162
        $region62: #{tpu_custom_call.1} parent=59 // pred_check_branch
          %395 = sbr.rel (%p393) target = $region64
        $region63: #{tpu_custom_call.1} parent=59 // pred_region
          %397 = dma.done [#allocation3], 128
        $region64: #{tpu_custom_call.1} parent=59 // pred_fallthru
          _
        // Predicated region
        $region65: #{tpu_custom_call.1} parent=59 // pred_check
          %p398 = pneg %p225
        $region66: #{tpu_custom_call.1} parent=59 // pred_check_branch
          %400 = sbr.rel (%p398) target = $region68
        $region67: #{tpu_custom_call.1} parent=59 // pred_region
          %402 = dma.done [#allocation6], 2048
        $region68: #{tpu_custom_call.1} parent=59 // pred_fallthru
          _
        // Predicated region
        $region69: #{tpu_custom_call.1} parent=59 // pred_check
          %p403 = pneg %p246
        $region70: #{tpu_custom_call.1} parent=59 // pred_check_branch
          %405 = sbr.rel (%p403) target = $region72
        $region71: #{tpu_custom_call.1} parent=59 // pred_region
          %407 = dma.done [#allocation6], 256
        $region72: #{tpu_custom_call.1} parent=59 // pred_fallthru
          _
        %p408 = scmp.lt.s32.totalorder %s31, 1
        %s409 = scalar_select %p408, %s31, 1
        %s410 = smul.addr %s409, 8
        %s411 = scalar_lea.vmem %s0, %s410
        %p412 = pneg %p52
        %p413 = pneg %p49
        %p414 = scmp.lt.s32.totalorder %s31, 1
        %s415 = scalar_select %p414, %s31, 1
        %s416 = smul.addr %s415, 8
        %s417 = scalar_lea.vmem %s1, %s416
        %p418 = pneg %p78
        %p419 = pneg %p75
        %p420 = pneg %p99
        %p421 = pneg %p96
        %p422 = pneg %p120
        %p423 = pneg %p117
        %p424 = pneg %p141
        %p425 = pneg %p138
        %p426 = pneg %p162
        %p427 = pneg %p159
        %p428 = pneg %p183
        %p429 = pneg %p180
        %p430 = pneg %p204
        %p431 = pneg %p201
        %p432 = pneg %p225
        %p433 = pneg %p222
        %p434 = pneg %p246
        %p435 = pneg %p243
        %p436 = pneg %p272
        %p437 = pneg %p269
        %s438 = sand.u32 %s259, 1
        %s439 = scalar_lea.sflag [#allocation4], %s438
        %s440 = sand.u32 %s259, 1
        %s441 = smul.addr %s440, 8
        %s442 = scalar_lea.vmem [#allocation8], %s441
        %p443 = pneg %p298
        %p444 = pneg %p295
        %s445 = sand.u32 %s285, 1
        %s446 = scalar_lea.sflag [#allocation10], %s445
        %s447 = sand.u32 %s285, 1
        %s448 = smul.addr %s447, 8
        %s449 = scalar_lea.vmem [#allocation9], %s448
        %p450 = scmp.lt.s32.totalorder %s31, 1
        %s451 = scalar_select %p450, %s31, 1
        %s452 = smul.addr %s451, 8
        %s453 = scalar_lea.vmem %s0, %s452
        %p454 = scmp.lt.s32.totalorder %s31, 1
        %s455 = scalar_select %p454, %s31, 1
        %s456 = smul.addr %s455, 8
        %s457 = scalar_lea.vmem %s1, %s456
        %v458 = vld [vmem:[%s453] sm:$0xff]
        %v459 = vld [vmem:[%s457] sm:$0xff]
        %v460 = vld [vmem:[%s2] sm:$0xff]
        %v461 = vld [vmem:[%s2 + $0x8] sm:$0xff]
        %v462 = vld [vmem:[%s2 + $0x10] sm:$0xff]
        %v463 = vld [vmem:[%s2 + $0x18] sm:$0xff]
        %v464 = vld [vmem:[%s2 + $0x20] sm:$0xff]
        %v465 = vld [vmem:[%s2 + $0x28] sm:$0xff]
        %v466 = vld [vmem:[%s2 + $0x30] sm:$0xff]
        %v467 = vld [vmem:[%s2 + $0x38] sm:$0xff]
        %v468 = vld [vmem:[%s3] sm:$0xff]
        %vm469 = vcmask 64512
        %v471 = vsel %vm469, %v459, 0
        %473 = vmatpush.msra.mxu0 0.0
        %474 = vmatpush.msra.mxu0 0.0
        %475 = vmatpush.msra.mxu0 0.0
        %476 = vmatpush.msra.mxu0 0.0
        %477 = vmatpush.msra.mxu0 0.0
        %478 = vmatpush.msra.mxu0 0.0
        %479 = vmatpush.msra.mxu0 0.0
        %480 = vmatpush.msra.mxu0 0.0
        %481 = vmatpush.msra.mxu0 0.0
        %482 = vmatpush.msra.mxu0 0.0
        %483 = vmatpush.msra.mxu0 0.0
        %484 = vmatpush.msra.mxu0 0.0
        %485 = vmatpush.msra.mxu0 0.0
        %486 = vmatpush.msra.mxu0 0.0
        %487 = vmatpush.msra.mxu0 0.0
        %v488 = vand.u32 %v468, 4294901760
        %489 = vmatpush.msra.mxu0 %v488
        %v490 = vand.u32 %v471, 4294901760
        %v491 = vsub.f32 %v471, %v490
        %v492 = vand.u32 %v491, 4294901760
        %v493 = vsub.f32 %v491, %v492
        %v494 = vand.u32 %v493, 4294901760
        %495 = vmatmul.f32.gmra.mxu0 %v494
        %v496 = vpop.f32.mrf.mxu0
        %v497 = vadd.f32 0.0, %v496
        %498 = vdwg.mxu0
        %499 = vmatpush.msra.mxu0 0.0
        %500 = vmatpush.msra.mxu0 0.0
        %501 = vmatpush.msra.mxu0 0.0
        %502 = vmatpush.msra.mxu0 0.0
        %503 = vmatpush.msra.mxu0 0.0
        %504 = vmatpush.msra.mxu0 0.0
        %505 = vmatpush.msra.mxu0 0.0
        %506 = vmatpush.msra.mxu0 0.0
        %507 = vmatpush.msra.mxu0 0.0
        %508 = vmatpush.msra.mxu0 0.0
        %509 = vmatpush.msra.mxu0 0.0
        %510 = vmatpush.msra.mxu0 0.0
        %511 = vmatpush.msra.mxu0 0.0
        %512 = vmatpush.msra.mxu0 0.0
        %513 = vmatpush.msra.mxu0 0.0
        %v514 = vand.u32 %v468, 4294901760
        %v515 = vsub.f32 %v468, %v514
        %v516 = vand.u32 %v515, 4294901760
        %v517 = vsub.f32 %v515, %v516
        %v518 = vand.u32 %v517, 4294901760
        %519 = vmatpush.msra.mxu0 %v518
        %v520 = vand.u32 %v471, 4294901760
        %521 = vmatmul.f32.gmra.mxu0 %v520
        %v522 = vpop.f32.mrf.mxu0
        %v523 = vadd.f32 %v497, %v522
        %524 = vdwg.mxu0
        %525 = vmatpush.msra.mxu0 0.0
        %526 = vmatpush.msra.mxu0 0.0
        %527 = vmatpush.msra.mxu0 0.0
        %528 = vmatpush.msra.mxu0 0.0
        %529 = vmatpush.msra.mxu0 0.0
        %530 = vmatpush.msra.mxu0 0.0
        %531 = vmatpush.msra.mxu0 0.0
        %532 = vmatpush.msra.mxu0 0.0
        %533 = vmatpush.msra.mxu0 0.0
        %534 = vmatpush.msra.mxu0 0.0
        %535 = vmatpush.msra.mxu0 0.0
        %536 = vmatpush.msra.mxu0 0.0
        %537 = vmatpush.msra.mxu0 0.0
        %538 = vmatpush.msra.mxu0 0.0
        %539 = vmatpush.msra.mxu0 0.0
        %v540 = vand.u32 %v468, 4294901760
        %v541 = vsub.f32 %v468, %v540
        %542 = vmatpush.msra.mxu0 %v541
        %v543 = vand.u32 %v471, 4294901760
        %v544 = vsub.f32 %v471, %v543
        %545 = vmatmul.f32.gmra.mxu0 %v544
        %v546 = vpop.f32.mrf.mxu0
        %v547 = vadd.f32 %v523, %v546
        %548 = vdwg.mxu0
        %549 = vmatpush.msra.mxu0 0.0
        %550 = vmatpush.msra.mxu0 0.0
        %551 = vmatpush.msra.mxu0 0.0
        %552 = vmatpush.msra.mxu0 0.0
        %553 = vmatpush.msra.mxu0 0.0
        %554 = vmatpush.msra.mxu0 0.0
        %555 = vmatpush.msra.mxu0 0.0
        %556 = vmatpush.msra.mxu0 0.0
        %557 = vmatpush.msra.mxu0 0.0
        %558 = vmatpush.msra.mxu0 0.0
        %559 = vmatpush.msra.mxu0 0.0
        %560 = vmatpush.msra.mxu0 0.0
        %561 = vmatpush.msra.mxu0 0.0
        %562 = vmatpush.msra.mxu0 0.0
        %563 = vmatpush.msra.mxu0 0.0
        %v564 = vand.u32 %v468, 4294901760
        %565 = vmatpush.msra.mxu0 %v564
        %v566 = vand.u32 %v471, 4294901760
        %v567 = vsub.f32 %v471, %v566
        %v568 = vand.u32 %v567, 4294901760
        %569 = vmatmul.f32.gmra.mxu0 %v568
        %v570 = vpop.f32.mrf.mxu0
        %v571 = vadd.f32 %v547, %v570
        %572 = vdwg.mxu0
        %573 = vmatpush.msra.mxu0 0.0
        %574 = vmatpush.msra.mxu0 0.0
        %575 = vmatpush.msra.mxu0 0.0
        %576 = vmatpush.msra.mxu0 0.0
        %577 = vmatpush.msra.mxu0 0.0
        %578 = vmatpush.msra.mxu0 0.0
        %579 = vmatpush.msra.mxu0 0.0
        %580 = vmatpush.msra.mxu0 0.0
        %581 = vmatpush.msra.mxu0 0.0
        %582 = vmatpush.msra.mxu0 0.0
        %583 = vmatpush.msra.mxu0 0.0
        %584 = vmatpush.msra.mxu0 0.0
        %585 = vmatpush.msra.mxu0 0.0
        %586 = vmatpush.msra.mxu0 0.0
        %587 = vmatpush.msra.mxu0 0.0
        %v588 = vand.u32 %v468, 4294901760
        %v589 = vsub.f32 %v468, %v588
        %v590 = vand.u32 %v589, 4294901760
        %591 = vmatpush.msra.mxu0 %v590
        %v592 = vand.u32 %v471, 4294901760
        %593 = vmatmul.f32.gmra.mxu0 %v592
        %v594 = vpop.f32.mrf.mxu0
        %v595 = vadd.f32 %v571, %v594
        %596 = vdwg.mxu0
        %597 = vmatpush.msra.mxu0 0.0
        %598 = vmatpush.msra.mxu0 0.0
        %599 = vmatpush.msra.mxu0 0.0
        %600 = vmatpush.msra.mxu0 0.0
        %601 = vmatpush.msra.mxu0 0.0
        %602 = vmatpush.msra.mxu0 0.0
        %603 = vmatpush.msra.mxu0 0.0
        %604 = vmatpush.msra.mxu0 0.0
        %605 = vmatpush.msra.mxu0 0.0
        %606 = vmatpush.msra.mxu0 0.0
        %607 = vmatpush.msra.mxu0 0.0
        %608 = vmatpush.msra.mxu0 0.0
        %609 = vmatpush.msra.mxu0 0.0
        %610 = vmatpush.msra.mxu0 0.0
        %611 = vmatpush.msra.mxu0 0.0
        %v612 = vand.u32 %v468, 4294901760
        %613 = vmatpush.msra.mxu0 %v612
        %v614 = vand.u32 %v471, 4294901760
        %615 = vmatmul.f32.gmra.mxu0 %v614
        %v616 = vpop.f32.mrf.mxu0
        %v617 = vadd.f32 %v595, %v616
        %618 = vdwg.mxu0
        %vm619 = vcmask 523264
        %v621 = vsel %vm619, %v458, 0
        %623 = vmatpush.msra.mxu0 0.0
        %624 = vmatpush.msra.mxu0 0.0
        %625 = vmatpush.msra.mxu0 0.0
        %626 = vmatpush.msra.mxu0 0.0
        %627 = vmatpush.msra.mxu0 0.0
        %628 = vmatpush.msra.mxu0 0.0
        %629 = vmatpush.msra.mxu0 0.0
        %630 = vmatpush.msra.mxu0 0.0
        %v631 = vand.u32 %v467, 4294901760
        %632 = vmatpush.msra.mxu0 %v631
        %v633 = vand.u32 %v466, 4294901760
        %634 = vmatpush.msra.mxu0 %v633
        %v635 = vand.u32 %v465, 4294901760
        %636 = vmatpush.msra.mxu0 %v635
        %v637 = vand.u32 %v464, 4294901760
        %638 = vmatpush.msra.mxu0 %v637
        %v639 = vand.u32 %v463, 4294901760
        %640 = vmatpush.msra.mxu0 %v639
        %v641 = vand.u32 %v462, 4294901760
        %642 = vmatpush.msra.mxu0 %v641
        %v643 = vand.u32 %v461, 4294901760
        %644 = vmatpush.msra.mxu0 %v643
        %v645 = vand.u32 %v460, 4294901760
        %646 = vmatpush.msra.mxu0 %v645
        %v647 = vand.u32 %v621, 4294901760
        %v648 = vsub.f32 %v621, %v647
        %v649 = vand.u32 %v648, 4294901760
        %v650 = vsub.f32 %v648, %v649
        %v651 = vand.u32 %v650, 4294901760
        %652 = vmatmul.f32.gmra.mxu0 %v651
        %v653 = vpop.f32.mrf.mxu0
        %v654 = vadd.f32 %v617, %v653
        %655 = vdwg.mxu0
        %656 = vmatpush.msra.mxu0 0.0
        %657 = vmatpush.msra.mxu0 0.0
        %658 = vmatpush.msra.mxu0 0.0
        %659 = vmatpush.msra.mxu0 0.0
        %660 = vmatpush.msra.mxu0 0.0
        %661 = vmatpush.msra.mxu0 0.0
        %662 = vmatpush.msra.mxu0 0.0
        %663 = vmatpush.msra.mxu0 0.0
        %v664 = vand.u32 %v467, 4294901760
        %v665 = vsub.f32 %v467, %v664
        %v666 = vand.u32 %v665, 4294901760
        %v667 = vsub.f32 %v665, %v666
        %v668 = vand.u32 %v667, 4294901760
        %669 = vmatpush.msra.mxu0 %v668
        %v670 = vand.u32 %v466, 4294901760
        %v671 = vsub.f32 %v466, %v670
        %v672 = vand.u32 %v671, 4294901760
        %v673 = vsub.f32 %v671, %v672
        %v674 = vand.u32 %v673, 4294901760
        %675 = vmatpush.msra.mxu0 %v674
        %v676 = vand.u32 %v465, 4294901760
        %v677 = vsub.f32 %v465, %v676
        %v678 = vand.u32 %v677, 4294901760
        %v679 = vsub.f32 %v677, %v678
        %v680 = vand.u32 %v679, 4294901760
        %681 = vmatpush.msra.mxu0 %v680
        %v682 = vand.u32 %v464, 4294901760
        %v683 = vsub.f32 %v464, %v682
        %v684 = vand.u32 %v683, 4294901760
        %v685 = vsub.f32 %v683, %v684
        %v686 = vand.u32 %v685, 4294901760
        %687 = vmatpush.msra.mxu0 %v686
        %v688 = vand.u32 %v463, 4294901760
        %v689 = vsub.f32 %v463, %v688
        %v690 = vand.u32 %v689, 4294901760
        %v691 = vsub.f32 %v689, %v690
        %v692 = vand.u32 %v691, 4294901760
        %693 = vmatpush.msra.mxu0 %v692
        %v694 = vand.u32 %v462, 4294901760
        %v695 = vsub.f32 %v462, %v694
        %v696 = vand.u32 %v695, 4294901760
        %v697 = vsub.f32 %v695, %v696
        %v698 = vand.u32 %v697, 4294901760
        %699 = vmatpush.msra.mxu0 %v698
        %v700 = vand.u32 %v461, 4294901760
        %v701 = vsub.f32 %v461, %v700
        %v702 = vand.u32 %v701, 4294901760
        %v703 = vsub.f32 %v701, %v702
        %v704 = vand.u32 %v703, 4294901760
        %705 = vmatpush.msra.mxu0 %v704
        %v706 = vand.u32 %v460, 4294901760
        %v707 = vsub.f32 %v460, %v706
        %v708 = vand.u32 %v707, 4294901760
        %v709 = vsub.f32 %v707, %v708
        %v710 = vand.u32 %v709, 4294901760
        %711 = vmatpush.msra.mxu0 %v710
        %v712 = vand.u32 %v621, 4294901760
        %713 = vmatmul.f32.gmra.mxu0 %v712
        %v714 = vpop.f32.mrf.mxu0
        %v715 = vadd.f32 %v654, %v714
        %716 = vdwg.mxu0
        %717 = vmatpush.msra.mxu0 0.0
        %718 = vmatpush.msra.mxu0 0.0
        %719 = vmatpush.msra.mxu0 0.0
        %720 = vmatpush.msra.mxu0 0.0
        %721 = vmatpush.msra.mxu0 0.0
        %722 = vmatpush.msra.mxu0 0.0
        %723 = vmatpush.msra.mxu0 0.0
        %724 = vmatpush.msra.mxu0 0.0
        %v725 = vand.u32 %v467, 4294901760
        %v726 = vsub.f32 %v467, %v725
        %727 = vmatpush.msra.mxu0 %v726
        %v728 = vand.u32 %v466, 4294901760
        %v729 = vsub.f32 %v466, %v728
        %730 = vmatpush.msra.mxu0 %v729
        %v731 = vand.u32 %v465, 4294901760
        %v732 = vsub.f32 %v465, %v731
        %733 = vmatpush.msra.mxu0 %v732
        %v734 = vand.u32 %v464, 4294901760
        %v735 = vsub.f32 %v464, %v734
        %736 = vmatpush.msra.mxu0 %v735
        %v737 = vand.u32 %v463, 4294901760
        %v738 = vsub.f32 %v463, %v737
        %739 = vmatpush.msra.mxu0 %v738
        %v740 = vand.u32 %v462, 4294901760
        %v741 = vsub.f32 %v462, %v740
        %742 = vmatpush.msra.mxu0 %v741
        %v743 = vand.u32 %v461, 4294901760
        %v744 = vsub.f32 %v461, %v743
        %745 = vmatpush.msra.mxu0 %v744
        %v746 = vand.u32 %v460, 4294901760
        %v747 = vsub.f32 %v460, %v746
        %748 = vmatpush.msra.mxu0 %v747
        %v749 = vand.u32 %v621, 4294901760
        %v750 = vsub.f32 %v621, %v749
        %751 = vmatmul.f32.gmra.mxu0 %v750
        %v752 = vpop.f32.mrf.mxu0
        %v753 = vadd.f32 %v715, %v752
        %754 = vdwg.mxu0
        %755 = vmatpush.msra.mxu0 0.0
        %756 = vmatpush.msra.mxu0 0.0
        %757 = vmatpush.msra.mxu0 0.0
        %758 = vmatpush.msra.mxu0 0.0
        %759 = vmatpush.msra.mxu0 0.0
        %760 = vmatpush.msra.mxu0 0.0
        %761 = vmatpush.msra.mxu0 0.0
        %762 = vmatpush.msra.mxu0 0.0
        %v763 = vand.u32 %v467, 4294901760
        %764 = vmatpush.msra.mxu0 %v763
        %v765 = vand.u32 %v466, 4294901760
        %766 = vmatpush.msra.mxu0 %v765
        %v767 = vand.u32 %v465, 4294901760
        %768 = vmatpush.msra.mxu0 %v767
        %v769 = vand.u32 %v464, 4294901760
        %770 = vmatpush.msra.mxu0 %v769
        %v771 = vand.u32 %v463, 4294901760
        %772 = vmatpush.msra.mxu0 %v771
        %v773 = vand.u32 %v462, 4294901760
        %774 = vmatpush.msra.mxu0 %v773
        %v775 = vand.u32 %v461, 4294901760
        %776 = vmatpush.msra.mxu0 %v775
        %v777 = vand.u32 %v460, 4294901760
        %778 = vmatpush.msra.mxu0 %v777
        %v779 = vand.u32 %v621, 4294901760
        %v780 = vsub.f32 %v621, %v779
        %v781 = vand.u32 %v780, 4294901760
        %782 = vmatmul.f32.gmra.mxu0 %v781
        %v783 = vpop.f32.mrf.mxu0
        %v784 = vadd.f32 %v753, %v783
        %785 = vdwg.mxu0
        %786 = vmatpush.msra.mxu0 0.0
        %787 = vmatpush.msra.mxu0 0.0
        %788 = vmatpush.msra.mxu0 0.0
        %789 = vmatpush.msra.mxu0 0.0
        %790 = vmatpush.msra.mxu0 0.0
        %791 = vmatpush.msra.mxu0 0.0
        %792 = vmatpush.msra.mxu0 0.0
        %793 = vmatpush.msra.mxu0 0.0
        %v794 = vand.u32 %v467, 4294901760
        %v795 = vsub.f32 %v467, %v794
        %v796 = vand.u32 %v795, 4294901760
        %797 = vmatpush.msra.mxu0 %v796
        %v798 = vand.u32 %v466, 4294901760
        %v799 = vsub.f32 %v466, %v798
        %v800 = vand.u32 %v799, 4294901760
        %801 = vmatpush.msra.mxu0 %v800
        %v802 = vand.u32 %v465, 4294901760
        %v803 = vsub.f32 %v465, %v802
        %v804 = vand.u32 %v803, 4294901760
        %805 = vmatpush.msra.mxu0 %v804
        %v806 = vand.u32 %v464, 4294901760
        %v807 = vsub.f32 %v464, %v806
        %v808 = vand.u32 %v807, 4294901760
        %809 = vmatpush.msra.mxu0 %v808
        %v810 = vand.u32 %v463, 4294901760
        %v811 = vsub.f32 %v463, %v810
        %v812 = vand.u32 %v811, 4294901760
        %813 = vmatpush.msra.mxu0 %v812
        %v814 = vand.u32 %v462, 4294901760
        %v815 = vsub.f32 %v462, %v814
        %v816 = vand.u32 %v815, 4294901760
        %817 = vmatpush.msra.mxu0 %v816
        %v818 = vand.u32 %v461, 4294901760
        %v819 = vsub.f32 %v461, %v818
        %v820 = vand.u32 %v819, 4294901760
        %821 = vmatpush.msra.mxu0 %v820
        %v822 = vand.u32 %v460, 4294901760
        %v823 = vsub.f32 %v460, %v822
        %v824 = vand.u32 %v823, 4294901760
        %825 = vmatpush.msra.mxu0 %v824
        %v826 = vand.u32 %v621, 4294901760
        %827 = vmatmul.f32.gmra.mxu0 %v826
        %v828 = vpop.f32.mrf.mxu0
        %v829 = vadd.f32 %v784, %v828
        %830 = vdwg.mxu0
        %831 = vmatpush.msra.mxu0 0.0
        %832 = vmatpush.msra.mxu0 0.0
        %833 = vmatpush.msra.mxu0 0.0
        %834 = vmatpush.msra.mxu0 0.0
        %835 = vmatpush.msra.mxu0 0.0
        %836 = vmatpush.msra.mxu0 0.0
        %837 = vmatpush.msra.mxu0 0.0
        %838 = vmatpush.msra.mxu0 0.0
        %v839 = vand.u32 %v467, 4294901760
        %840 = vmatpush.msra.mxu0 %v839
        %v841 = vand.u32 %v466, 4294901760
        %842 = vmatpush.msra.mxu0 %v841
        %v843 = vand.u32 %v465, 4294901760
        %844 = vmatpush.msra.mxu0 %v843
        %v845 = vand.u32 %v464, 4294901760
        %846 = vmatpush.msra.mxu0 %v845
        %v847 = vand.u32 %v463, 4294901760
        %848 = vmatpush.msra.mxu0 %v847
        %v849 = vand.u32 %v462, 4294901760
        %850 = vmatpush.msra.mxu0 %v849
        %v851 = vand.u32 %v461, 4294901760
        %852 = vmatpush.msra.mxu0 %v851
        %v853 = vand.u32 %v460, 4294901760
        %854 = vmatpush.msra.mxu0 %v853
        %v855 = vand.u32 %v621, 4294901760
        %856 = vmatmul.f32.gmra.mxu0 %v855
        %v857 = vpop.f32.mrf.mxu0
        %v858 = vadd.f32 %v829, %v857
        %859 = vdwg.mxu0
        %v860 = vld [vmem:[%s6] sm:$0x1]
        %v862 = vperm.slane %v860, 0
        %v864 = vadd.f32 %v858, %v862
        %v865 = vld [vmem:[%s4] sm:$0xff]
        %v866 = vld [vmem:[%s4 + $0x8] sm:$0xff]
        %v867 = vld [vmem:[%s4 + $0x10] sm:$0xff]
        %v868 = vld [vmem:[%s4 + $0x18] sm:$0xff]
        %v869 = vld [vmem:[%s4 + $0x20] sm:$0xff]
        %v870 = vld [vmem:[%s4 + $0x28] sm:$0xff]
        %v871 = vld [vmem:[%s4 + $0x30] sm:$0xff]
        %v872 = vld [vmem:[%s4 + $0x38] sm:$0xff]
        %v873 = vld [vmem:[#allocation2] sm:$0xff]
        %874 = vmatpush.msra.mxu0 0.0
        %875 = vmatpush.msra.mxu0 0.0
        %876 = vmatpush.msra.mxu0 0.0
        %877 = vmatpush.msra.mxu0 0.0
        %878 = vmatpush.msra.mxu0 0.0
        %879 = vmatpush.msra.mxu0 0.0
        %880 = vmatpush.msra.mxu0 0.0
        %881 = vmatpush.msra.mxu0 0.0
        %882 = vmatpush.msra.mxu0 0.0
        %883 = vmatpush.msra.mxu0 0.0
        %884 = vmatpush.msra.mxu0 0.0
        %885 = vmatpush.msra.mxu0 0.0
        %886 = vmatpush.msra.mxu0 0.0
        %887 = vmatpush.msra.mxu0 0.0
        %888 = vmatpush.msra.mxu0 0.0
        %v889 = vand.u32 %v873, 4294901760
        %890 = vmatpush.msra.mxu0 %v889
        %v891 = vand.u32 %v471, 4294901760
        %v892 = vsub.f32 %v471, %v891
        %v893 = vand.u32 %v892, 4294901760
        %v894 = vsub.f32 %v892, %v893
        %v895 = vand.u32 %v894, 4294901760
        %896 = vmatmul.f32.gmra.mxu0 %v895
        %v897 = vpop.f32.mrf.mxu0
        %v898 = vadd.f32 0.0, %v897
        %899 = vdwg.mxu0
        %900 = vmatpush.msra.mxu0 0.0
        %901 = vmatpush.msra.mxu0 0.0
        %902 = vmatpush.msra.mxu0 0.0
        %903 = vmatpush.msra.mxu0 0.0
        %904 = vmatpush.msra.mxu0 0.0
        %905 = vmatpush.msra.mxu0 0.0
        %906 = vmatpush.msra.mxu0 0.0
        %907 = vmatpush.msra.mxu0 0.0
        %908 = vmatpush.msra.mxu0 0.0
        %909 = vmatpush.msra.mxu0 0.0
        %910 = vmatpush.msra.mxu0 0.0
        %911 = vmatpush.msra.mxu0 0.0
        %912 = vmatpush.msra.mxu0 0.0
        %913 = vmatpush.msra.mxu0 0.0
        %914 = vmatpush.msra.mxu0 0.0
        %v915 = vand.u32 %v873, 4294901760
        %v916 = vsub.f32 %v873, %v915
        %v917 = vand.u32 %v916, 4294901760
        %v918 = vsub.f32 %v916, %v917
        %v919 = vand.u32 %v918, 4294901760
        %920 = vmatpush.msra.mxu0 %v919
        %v921 = vand.u32 %v471, 4294901760
        %922 = vmatmul.f32.gmra.mxu0 %v921
        %v923 = vpop.f32.mrf.mxu0
        %v924 = vadd.f32 %v898, %v923
        %925 = vdwg.mxu0
        %926 = vmatpush.msra.mxu0 0.0
        %927 = vmatpush.msra.mxu0 0.0
        %928 = vmatpush.msra.mxu0 0.0
        %929 = vmatpush.msra.mxu0 0.0
        %930 = vmatpush.msra.mxu0 0.0
        %931 = vmatpush.msra.mxu0 0.0
        %932 = vmatpush.msra.mxu0 0.0
        %933 = vmatpush.msra.mxu0 0.0
        %934 = vmatpush.msra.mxu0 0.0
        %935 = vmatpush.msra.mxu0 0.0
        %936 = vmatpush.msra.mxu0 0.0
        %937 = vmatpush.msra.mxu0 0.0
        %938 = vmatpush.msra.mxu0 0.0
        %939 = vmatpush.msra.mxu0 0.0
        %940 = vmatpush.msra.mxu0 0.0
        %v941 = vand.u32 %v873, 4294901760
        %v942 = vsub.f32 %v873, %v941
        %943 = vmatpush.msra.mxu0 %v942
        %v944 = vand.u32 %v471, 4294901760
        %v945 = vsub.f32 %v471, %v944
        %946 = vmatmul.f32.gmra.mxu0 %v945
        %v947 = vpop.f32.mrf.mxu0
        %v948 = vadd.f32 %v924, %v947
        %949 = vdwg.mxu0
        %950 = vmatpush.msra.mxu0 0.0
        %951 = vmatpush.msra.mxu0 0.0
        %952 = vmatpush.msra.mxu0 0.0
        %953 = vmatpush.msra.mxu0 0.0
        %954 = vmatpush.msra.mxu0 0.0
        %955 = vmatpush.msra.mxu0 0.0
        %956 = vmatpush.msra.mxu0 0.0
        %957 = vmatpush.msra.mxu0 0.0
        %958 = vmatpush.msra.mxu0 0.0
        %959 = vmatpush.msra.mxu0 0.0
        %960 = vmatpush.msra.mxu0 0.0
        %961 = vmatpush.msra.mxu0 0.0
        %962 = vmatpush.msra.mxu0 0.0
        %963 = vmatpush.msra.mxu0 0.0
        %964 = vmatpush.msra.mxu0 0.0
        %v965 = vand.u32 %v873, 4294901760
        %966 = vmatpush.msra.mxu0 %v965
        %v967 = vand.u32 %v471, 4294901760
        %v968 = vsub.f32 %v471, %v967
        %v969 = vand.u32 %v968, 4294901760
        %970 = vmatmul.f32.gmra.mxu0 %v969
        %v971 = vpop.f32.mrf.mxu0
        %v972 = vadd.f32 %v948, %v971
        %973 = vdwg.mxu0
        %974 = vmatpush.msra.mxu0 0.0
        %975 = vmatpush.msra.mxu0 0.0
        %976 = vmatpush.msra.mxu0 0.0
        %977 = vmatpush.msra.mxu0 0.0
        %978 = vmatpush.msra.mxu0 0.0
        %979 = vmatpush.msra.mxu0 0.0
        %980 = vmatpush.msra.mxu0 0.0
        %981 = vmatpush.msra.mxu0 0.0
        %982 = vmatpush.msra.mxu0 0.0
        %983 = vmatpush.msra.mxu0 0.0
        %984 = vmatpush.msra.mxu0 0.0
        %985 = vmatpush.msra.mxu0 0.0
        %986 = vmatpush.msra.mxu0 0.0
        %987 = vmatpush.msra.mxu0 0.0
        %988 = vmatpush.msra.mxu0 0.0
        %v989 = vand.u32 %v873, 4294901760
        %v990 = vsub.f32 %v873, %v989
        %v991 = vand.u32 %v990, 4294901760
        %992 = vmatpush.msra.mxu0 %v991
        %v993 = vand.u32 %v471, 4294901760
        %994 = vmatmul.f32.gmra.mxu0 %v993
        %v995 = vpop.f32.mrf.mxu0
        %v996 = vadd.f32 %v972, %v995
        %997 = vdwg.mxu0
        %998 = vmatpush.msra.mxu0 0.0
        %999 = vmatpush.msra.mxu0 0.0
        %1000 = vmatpush.msra.mxu0 0.0
        %1001 = vmatpush.msra.mxu0 0.0
        %1002 = vmatpush.msra.mxu0 0.0
        %1003 = vmatpush.msra.mxu0 0.0
        %1004 = vmatpush.msra.mxu0 0.0
        %1005 = vmatpush.msra.mxu0 0.0
        %1006 = vmatpush.msra.mxu0 0.0
        %1007 = vmatpush.msra.mxu0 0.0
        %1008 = vmatpush.msra.mxu0 0.0
        %1009 = vmatpush.msra.mxu0 0.0
        %1010 = vmatpush.msra.mxu0 0.0
        %1011 = vmatpush.msra.mxu0 0.0
        %1012 = vmatpush.msra.mxu0 0.0
        %v1013 = vand.u32 %v873, 4294901760
        %1014 = vmatpush.msra.mxu0 %v1013
        %v1015 = vand.u32 %v471, 4294901760
        %1016 = vmatmul.f32.gmra.mxu0 %v1015
        %v1017 = vpop.f32.mrf.mxu0
        %v1018 = vadd.f32 %v996, %v1017
        %1019 = vdwg.mxu0
        %1020 = vmatpush.msra.mxu0 0.0
        %1021 = vmatpush.msra.mxu0 0.0
        %1022 = vmatpush.msra.mxu0 0.0
        %1023 = vmatpush.msra.mxu0 0.0
        %1024 = vmatpush.msra.mxu0 0.0
        %1025 = vmatpush.msra.mxu0 0.0
        %1026 = vmatpush.msra.mxu0 0.0
        %1027 = vmatpush.msra.mxu0 0.0
        %v1028 = vand.u32 %v872, 4294901760
        %1029 = vmatpush.msra.mxu0 %v1028
        %v1030 = vand.u32 %v871, 4294901760
        %1031 = vmatpush.msra.mxu0 %v1030
        %v1032 = vand.u32 %v870, 4294901760
        %1033 = vmatpush.msra.mxu0 %v1032
        %v1034 = vand.u32 %v869, 4294901760
        %1035 = vmatpush.msra.mxu0 %v1034
        %v1036 = vand.u32 %v868, 4294901760
        %1037 = vmatpush.msra.mxu0 %v1036
        %v1038 = vand.u32 %v867, 4294901760
        %1039 = vmatpush.msra.mxu0 %v1038
        %v1040 = vand.u32 %v866, 4294901760
        %1041 = vmatpush.msra.mxu0 %v1040
        %v1042 = vand.u32 %v865, 4294901760
        %1043 = vmatpush.msra.mxu0 %v1042
        %v1044 = vand.u32 %v621, 4294901760
        %v1045 = vsub.f32 %v621, %v1044
        %v1046 = vand.u32 %v1045, 4294901760
        %v1047 = vsub.f32 %v1045, %v1046
        %v1048 = vand.u32 %v1047, 4294901760
        %1049 = vmatmul.f32.gmra.mxu0 %v1048
        %v1050 = vpop.f32.mrf.mxu0
        %v1051 = vadd.f32 %v1018, %v1050
        %1052 = vdwg.mxu0
        %1053 = vmatpush.msra.mxu0 0.0
        %1054 = vmatpush.msra.mxu0 0.0
        %1055 = vmatpush.msra.mxu0 0.0
        %1056 = vmatpush.msra.mxu0 0.0
        %1057 = vmatpush.msra.mxu0 0.0
        %1058 = vmatpush.msra.mxu0 0.0
        %1059 = vmatpush.msra.mxu0 0.0
        %1060 = vmatpush.msra.mxu0 0.0
        %v1061 = vand.u32 %v872, 4294901760
        %v1062 = vsub.f32 %v872, %v1061
        %v1063 = vand.u32 %v1062, 4294901760
        %v1064 = vsub.f32 %v1062, %v1063
        %v1065 = vand.u32 %v1064, 4294901760
        %1066 = vmatpush.msra.mxu0 %v1065
        %v1067 = vand.u32 %v871, 4294901760
        %v1068 = vsub.f32 %v871, %v1067
        %v1069 = vand.u32 %v1068, 4294901760
        %v1070 = vsub.f32 %v1068, %v1069
        %v1071 = vand.u32 %v1070, 4294901760
        %1072 = vmatpush.msra.mxu0 %v1071
        %v1073 = vand.u32 %v870, 4294901760
        %v1074 = vsub.f32 %v870, %v1073
        %v1075 = vand.u32 %v1074, 4294901760
        %v1076 = vsub.f32 %v1074, %v1075
        %v1077 = vand.u32 %v1076, 4294901760
        %1078 = vmatpush.msra.mxu0 %v1077
        %v1079 = vand.u32 %v869, 4294901760
        %v1080 = vsub.f32 %v869, %v1079
        %v1081 = vand.u32 %v1080, 4294901760
        %v1082 = vsub.f32 %v1080, %v1081
        %v1083 = vand.u32 %v1082, 4294901760
        %1084 = vmatpush.msra.mxu0 %v1083
        %v1085 = vand.u32 %v868, 4294901760
        %v1086 = vsub.f32 %v868, %v1085
        %v1087 = vand.u32 %v1086, 4294901760
        %v1088 = vsub.f32 %v1086, %v1087
        %v1089 = vand.u32 %v1088, 4294901760
        %1090 = vmatpush.msra.mxu0 %v1089
        %v1091 = vand.u32 %v867, 4294901760
        %v1092 = vsub.f32 %v867, %v1091
        %v1093 = vand.u32 %v1092, 4294901760
        %v1094 = vsub.f32 %v1092, %v1093
        %v1095 = vand.u32 %v1094, 4294901760
        %1096 = vmatpush.msra.mxu0 %v1095
        %v1097 = vand.u32 %v866, 4294901760
        %v1098 = vsub.f32 %v866, %v1097
        %v1099 = vand.u32 %v1098, 4294901760
        %v1100 = vsub.f32 %v1098, %v1099
        %v1101 = vand.u32 %v1100, 4294901760
        %1102 = vmatpush.msra.mxu0 %v1101
        %v1103 = vand.u32 %v865, 4294901760
        %v1104 = vsub.f32 %v865, %v1103
        %v1105 = vand.u32 %v1104, 4294901760
        %v1106 = vsub.f32 %v1104, %v1105
        %v1107 = vand.u32 %v1106, 4294901760
        %1108 = vmatpush.msra.mxu0 %v1107
        %v1109 = vand.u32 %v621, 4294901760
        %1110 = vmatmul.f32.gmra.mxu0 %v1109
        %v1111 = vpop.f32.mrf.mxu0
        %v1112 = vadd.f32 %v1051, %v1111
        %1113 = vdwg.mxu0
        %1114 = vmatpush.msra.mxu0 0.0
        %1115 = vmatpush.msra.mxu0 0.0
        %1116 = vmatpush.msra.mxu0 0.0
        %1117 = vmatpush.msra.mxu0 0.0
        %1118 = vmatpush.msra.mxu0 0.0
        %1119 = vmatpush.msra.mxu0 0.0
        %1120 = vmatpush.msra.mxu0 0.0
        %1121 = vmatpush.msra.mxu0 0.0
        %v1122 = vand.u32 %v872, 4294901760
        %v1123 = vsub.f32 %v872, %v1122
        %1124 = vmatpush.msra.mxu0 %v1123
        %v1125 = vand.u32 %v871, 4294901760
        %v1126 = vsub.f32 %v871, %v1125
        %1127 = vmatpush.msra.mxu0 %v1126
        %v1128 = vand.u32 %v870, 4294901760
        %v1129 = vsub.f32 %v870, %v1128
        %1130 = vmatpush.msra.mxu0 %v1129
        %v1131 = vand.u32 %v869, 4294901760
        %v1132 = vsub.f32 %v869, %v1131
        %1133 = vmatpush.msra.mxu0 %v1132
        %v1134 = vand.u32 %v868, 4294901760
        %v1135 = vsub.f32 %v868, %v1134
        %1136 = vmatpush.msra.mxu0 %v1135
        %v1137 = vand.u32 %v867, 4294901760
        %v1138 = vsub.f32 %v867, %v1137
        %1139 = vmatpush.msra.mxu0 %v1138
        %v1140 = vand.u32 %v866, 4294901760
        %v1141 = vsub.f32 %v866, %v1140
        %1142 = vmatpush.msra.mxu0 %v1141
        %v1143 = vand.u32 %v865, 4294901760
        %v1144 = vsub.f32 %v865, %v1143
        %1145 = vmatpush.msra.mxu0 %v1144
        %v1146 = vand.u32 %v621, 4294901760
        %v1147 = vsub.f32 %v621, %v1146
        %1148 = vmatmul.f32.gmra.mxu0 %v1147
        %v1149 = vpop.f32.mrf.mxu0
        %v1150 = vadd.f32 %v1112, %v1149
        %1151 = vdwg.mxu0
        %1152 = vmatpush.msra.mxu0 0.0
        %1153 = vmatpush.msra.mxu0 0.0
        %1154 = vmatpush.msra.mxu0 0.0
        %1155 = vmatpush.msra.mxu0 0.0
        %1156 = vmatpush.msra.mxu0 0.0
        %1157 = vmatpush.msra.mxu0 0.0
        %1158 = vmatpush.msra.mxu0 0.0
        %1159 = vmatpush.msra.mxu0 0.0
        %v1160 = vand.u32 %v872, 4294901760
        %1161 = vmatpush.msra.mxu0 %v1160
        %v1162 = vand.u32 %v871, 4294901760
        %1163 = vmatpush.msra.mxu0 %v1162
        %v1164 = vand.u32 %v870, 4294901760
        %1165 = vmatpush.msra.mxu0 %v1164
        %v1166 = vand.u32 %v869, 4294901760
        %1167 = vmatpush.msra.mxu0 %v1166
        %v1168 = vand.u32 %v868, 4294901760
        %1169 = vmatpush.msra.mxu0 %v1168
        %v1170 = vand.u32 %v867, 4294901760
        %1171 = vmatpush.msra.mxu0 %v1170
        %v1172 = vand.u32 %v866, 4294901760
        %1173 = vmatpush.msra.mxu0 %v1172
        %v1174 = vand.u32 %v865, 4294901760
        %1175 = vmatpush.msra.mxu0 %v1174
        %v1176 = vand.u32 %v621, 4294901760
        %v1177 = vsub.f32 %v621, %v1176
        %v1178 = vand.u32 %v1177, 4294901760
        %1179 = vmatmul.f32.gmra.mxu0 %v1178
        %v1180 = vpop.f32.mrf.mxu0
        %v1181 = vadd.f32 %v1150, %v1180
        %1182 = vdwg.mxu0
        %1183 = vmatpush.msra.mxu0 0.0
        %1184 = vmatpush.msra.mxu0 0.0
        %1185 = vmatpush.msra.mxu0 0.0
        %1186 = vmatpush.msra.mxu0 0.0
        %1187 = vmatpush.msra.mxu0 0.0
        %1188 = vmatpush.msra.mxu0 0.0
        %1189 = vmatpush.msra.mxu0 0.0
        %1190 = vmatpush.msra.mxu0 0.0
        %v1191 = vand.u32 %v872, 4294901760
        %v1192 = vsub.f32 %v872, %v1191
        %v1193 = vand.u32 %v1192, 4294901760
        %1194 = vmatpush.msra.mxu0 %v1193
        %v1195 = vand.u32 %v871, 4294901760
        %v1196 = vsub.f32 %v871, %v1195
        %v1197 = vand.u32 %v1196, 4294901760
        %1198 = vmatpush.msra.mxu0 %v1197
        %v1199 = vand.u32 %v870, 4294901760
        %v1200 = vsub.f32 %v870, %v1199
        %v1201 = vand.u32 %v1200, 4294901760
        %1202 = vmatpush.msra.mxu0 %v1201
        %v1203 = vand.u32 %v869, 4294901760
        %v1204 = vsub.f32 %v869, %v1203
        %v1205 = vand.u32 %v1204, 4294901760
        %1206 = vmatpush.msra.mxu0 %v1205
        %v1207 = vand.u32 %v868, 4294901760
        %v1208 = vsub.f32 %v868, %v1207
        %v1209 = vand.u32 %v1208, 4294901760
        %1210 = vmatpush.msra.mxu0 %v1209
        %v1211 = vand.u32 %v867, 4294901760
        %v1212 = vsub.f32 %v867, %v1211
        %v1213 = vand.u32 %v1212, 4294901760
        %1214 = vmatpush.msra.mxu0 %v1213
        %v1215 = vand.u32 %v866, 4294901760
        %v1216 = vsub.f32 %v866, %v1215
        %v1217 = vand.u32 %v1216, 4294901760
        %1218 = vmatpush.msra.mxu0 %v1217
        %v1219 = vand.u32 %v865, 4294901760
        %v1220 = vsub.f32 %v865, %v1219
        %v1221 = vand.u32 %v1220, 4294901760
        %1222 = vmatpush.msra.mxu0 %v1221
        %v1223 = vand.u32 %v621, 4294901760
        %1224 = vmatmul.f32.gmra.mxu0 %v1223
        %v1225 = vpop.f32.mrf.mxu0
        %v1226 = vadd.f32 %v1181, %v1225
        %1227 = vdwg.mxu0
        %1228 = vmatpush.msra.mxu0 0.0
        %1229 = vmatpush.msra.mxu0 0.0
        %1230 = vmatpush.msra.mxu0 0.0
        %1231 = vmatpush.msra.mxu0 0.0
        %1232 = vmatpush.msra.mxu0 0.0
        %1233 = vmatpush.msra.mxu0 0.0
        %1234 = vmatpush.msra.mxu0 0.0
        %1235 = vmatpush.msra.mxu0 0.0
        %v1236 = vand.u32 %v872, 4294901760
        %1237 = vmatpush.msra.mxu0 %v1236
        %v1238 = vand.u32 %v871, 4294901760
        %1239 = vmatpush.msra.mxu0 %v1238
        %v1240 = vand.u32 %v870, 4294901760
        %1241 = vmatpush.msra.mxu0 %v1240
        %v1242 = vand.u32 %v869, 4294901760
        %1243 = vmatpush.msra.mxu0 %v1242
        %v1244 = vand.u32 %v868, 4294901760
        %1245 = vmatpush.msra.mxu0 %v1244
        %v1246 = vand.u32 %v867, 4294901760
        %1247 = vmatpush.msra.mxu0 %v1246
        %v1248 = vand.u32 %v866, 4294901760
        %1249 = vmatpush.msra.mxu0 %v1248
        %v1250 = vand.u32 %v865, 4294901760
        %1251 = vmatpush.msra.mxu0 %v1250
        %v1252 = vand.u32 %v621, 4294901760
        %1253 = vmatmul.f32.gmra.mxu0 %v1252
        %v1254 = vpop.f32.mrf.mxu0
        %v1255 = vadd.f32 %v1226, %v1254
        %1256 = vdwg.mxu0
        %v1257 = vld [vmem:[%s7] sm:$0x1]
        %v1259 = vperm.slane %v1257, 0
        %v1261 = vadd.f32 %v1255, %v1259
        %v1262 = vmul.f32 %v864, %v864
        %v1263 = vld [vmem:[#allocation5] sm:$0xff]
        %v1264 = vld [vmem:[#allocation5 + $0x8] sm:$0xff]
        %v1265 = vld [vmem:[#allocation5 + $0x10] sm:$0xff]
        %v1266 = vld [vmem:[#allocation5 + $0x18] sm:$0xff]
        %v1267 = vld [vmem:[#allocation5 + $0x20] sm:$0xff]
        %v1268 = vld [vmem:[#allocation5 + $0x28] sm:$0xff]
        %v1269 = vld [vmem:[#allocation5 + $0x30] sm:$0xff]
        %v1270 = vld [vmem:[#allocation5 + $0x38] sm:$0xff]
        %v1271 = vld [vmem:[#allocation5 + $0x40] sm:$0xff]
        %v1272 = vld [vmem:[#allocation5 + $0x48] sm:$0xff]
        %v1273 = vld [vmem:[#allocation5 + $0x50] sm:$0xff]
        %v1274 = vld [vmem:[#allocation5 + $0x58] sm:$0xff]
        %v1275 = vld [vmem:[#allocation5 + $0x60] sm:$0xff]
        %v1276 = vld [vmem:[#allocation5 + $0x68] sm:$0xff]
        %v1277 = vld [vmem:[#allocation5 + $0x70] sm:$0xff]
        %v1278 = vld [vmem:[#allocation5 + $0x78] sm:$0xff]
        %v1279 = vand.u32 %v1278, 4294901760
        %1280 = vmatpush.msra.mxu0 %v1279
        %v1281 = vand.u32 %v1277, 4294901760
        %1282 = vmatpush.msra.mxu0 %v1281
        %v1283 = vand.u32 %v1276, 4294901760
        %1284 = vmatpush.msra.mxu0 %v1283
        %v1285 = vand.u32 %v1275, 4294901760
        %1286 = vmatpush.msra.mxu0 %v1285
        %v1287 = vand.u32 %v1274, 4294901760
        %1288 = vmatpush.msra.mxu0 %v1287
        %v1289 = vand.u32 %v1273, 4294901760
        %1290 = vmatpush.msra.mxu0 %v1289
        %v1291 = vand.u32 %v1272, 4294901760
        %1292 = vmatpush.msra.mxu0 %v1291
        %v1293 = vand.u32 %v1271, 4294901760
        %1294 = vmatpush.msra.mxu0 %v1293
        %v1295 = vand.u32 %v1270, 4294901760
        %1296 = vmatpush.msra.mxu0 %v1295
        %v1297 = vand.u32 %v1269, 4294901760
        %1298 = vmatpush.msra.mxu0 %v1297
        %v1299 = vand.u32 %v1268, 4294901760
        %1300 = vmatpush.msra.mxu0 %v1299
        %v1301 = vand.u32 %v1267, 4294901760
        %1302 = vmatpush.msra.mxu0 %v1301
        %v1303 = vand.u32 %v1266, 4294901760
        %1304 = vmatpush.msra.mxu0 %v1303
        %v1305 = vand.u32 %v1265, 4294901760
        %1306 = vmatpush.msra.mxu0 %v1305
        %v1307 = vand.u32 %v1264, 4294901760
        %1308 = vmatpush.msra.mxu0 %v1307
        %v1309 = vand.u32 %v1263, 4294901760
        %1310 = vmatpush.msra.mxu0 %v1309
        %v1311 = vand.u32 %v1262, 4294901760
        %v1312 = vsub.f32 %v1262, %v1311
        %v1313 = vand.u32 %v1312, 4294901760
        %v1314 = vsub.f32 %v1312, %v1313
        %v1315 = vand.u32 %v1314, 4294901760
        %1316 = vmatmul.f32.gmra.mxu0 %v1315
        %v1317 = vpop.f32.mrf.mxu0
        %v1318 = vadd.f32 0.01, %v1317
        %1319 = vdwg.mxu0
        %v1320 = vand.u32 %v1278, 4294901760
        %v1321 = vsub.f32 %v1278, %v1320
        %v1322 = vand.u32 %v1321, 4294901760
        %v1323 = vsub.f32 %v1321, %v1322
        %v1324 = vand.u32 %v1323, 4294901760
        %1325 = vmatpush.msra.mxu0 %v1324
        %v1326 = vand.u32 %v1277, 4294901760
        %v1327 = vsub.f32 %v1277, %v1326
        %v1328 = vand.u32 %v1327, 4294901760
        %v1329 = vsub.f32 %v1327, %v1328
        %v1330 = vand.u32 %v1329, 4294901760
        %1331 = vmatpush.msra.mxu0 %v1330
        %v1332 = vand.u32 %v1276, 4294901760
        %v1333 = vsub.f32 %v1276, %v1332
        %v1334 = vand.u32 %v1333, 4294901760
        %v1335 = vsub.f32 %v1333, %v1334
        %v1336 = vand.u32 %v1335, 4294901760
        %1337 = vmatpush.msra.mxu0 %v1336
        %v1338 = vand.u32 %v1275, 4294901760
        %v1339 = vsub.f32 %v1275, %v1338
        %v1340 = vand.u32 %v1339, 4294901760
        %v1341 = vsub.f32 %v1339, %v1340
        %v1342 = vand.u32 %v1341, 4294901760
        %1343 = vmatpush.msra.mxu0 %v1342
        %v1344 = vand.u32 %v1274, 4294901760
        %v1345 = vsub.f32 %v1274, %v1344
        %v1346 = vand.u32 %v1345, 4294901760
        %v1347 = vsub.f32 %v1345, %v1346
        %v1348 = vand.u32 %v1347, 4294901760
        %1349 = vmatpush.msra.mxu0 %v1348
        %v1350 = vand.u32 %v1273, 4294901760
        %v1351 = vsub.f32 %v1273, %v1350
        %v1352 = vand.u32 %v1351, 4294901760
        %v1353 = vsub.f32 %v1351, %v1352
        %v1354 = vand.u32 %v1353, 4294901760
        %1355 = vmatpush.msra.mxu0 %v1354
        %v1356 = vand.u32 %v1272, 4294901760
        %v1357 = vsub.f32 %v1272, %v1356
        %v1358 = vand.u32 %v1357, 4294901760
        %v1359 = vsub.f32 %v1357, %v1358
        %v1360 = vand.u32 %v1359, 4294901760
        %1361 = vmatpush.msra.mxu0 %v1360
        %v1362 = vand.u32 %v1271, 4294901760
        %v1363 = vsub.f32 %v1271, %v1362
        %v1364 = vand.u32 %v1363, 4294901760
        %v1365 = vsub.f32 %v1363, %v1364
        %v1366 = vand.u32 %v1365, 4294901760
        %1367 = vmatpush.msra.mxu0 %v1366
        %v1368 = vand.u32 %v1270, 4294901760
        %v1369 = vsub.f32 %v1270, %v1368
        %v1370 = vand.u32 %v1369, 4294901760
        %v1371 = vsub.f32 %v1369, %v1370
        %v1372 = vand.u32 %v1371, 4294901760
        %1373 = vmatpush.msra.mxu0 %v1372
        %v1374 = vand.u32 %v1269, 4294901760
        %v1375 = vsub.f32 %v1269, %v1374
        %v1376 = vand.u32 %v1375, 4294901760
        %v1377 = vsub.f32 %v1375, %v1376
        %v1378 = vand.u32 %v1377, 4294901760
        %1379 = vmatpush.msra.mxu0 %v1378
        %v1380 = vand.u32 %v1268, 4294901760
        %v1381 = vsub.f32 %v1268, %v1380
        %v1382 = vand.u32 %v1381, 4294901760
        %v1383 = vsub.f32 %v1381, %v1382
        %v1384 = vand.u32 %v1383, 4294901760
        %1385 = vmatpush.msra.mxu0 %v1384
        %v1386 = vand.u32 %v1267, 4294901760
        %v1387 = vsub.f32 %v1267, %v1386
        %v1388 = vand.u32 %v1387, 4294901760
        %v1389 = vsub.f32 %v1387, %v1388
        %v1390 = vand.u32 %v1389, 4294901760
        %1391 = vmatpush.msra.mxu0 %v1390
        %v1392 = vand.u32 %v1266, 4294901760
        %v1393 = vsub.f32 %v1266, %v1392
        %v1394 = vand.u32 %v1393, 4294901760
        %v1395 = vsub.f32 %v1393, %v1394
        %v1396 = vand.u32 %v1395, 4294901760
        %1397 = vmatpush.msra.mxu0 %v1396
        %v1398 = vand.u32 %v1265, 4294901760
        %v1399 = vsub.f32 %v1265, %v1398
        %v1400 = vand.u32 %v1399, 4294901760
        %v1401 = vsub.f32 %v1399, %v1400
        %v1402 = vand.u32 %v1401, 4294901760
        %1403 = vmatpush.msra.mxu0 %v1402
        %v1404 = vand.u32 %v1264, 4294901760
        %v1405 = vsub.f32 %v1264, %v1404
        %v1406 = vand.u32 %v1405, 4294901760
        %v1407 = vsub.f32 %v1405, %v1406
        %v1408 = vand.u32 %v1407, 4294901760
        %1409 = vmatpush.msra.mxu0 %v1408
        %v1410 = vand.u32 %v1263, 4294901760
        %v1411 = vsub.f32 %v1263, %v1410
        %v1412 = vand.u32 %v1411, 4294901760
        %v1413 = vsub.f32 %v1411, %v1412
        %v1414 = vand.u32 %v1413, 4294901760
        %1415 = vmatpush.msra.mxu0 %v1414
        %v1416 = vand.u32 %v1262, 4294901760
        %1417 = vmatmul.f32.gmra.mxu0 %v1416
        %v1418 = vpop.f32.mrf.mxu0
        %v1419 = vadd.f32 %v1318, %v1418
        %1420 = vdwg.mxu0
        %v1421 = vand.u32 %v1278, 4294901760
        %v1422 = vsub.f32 %v1278, %v1421
        %1423 = vmatpush.msra.mxu0 %v1422
        %v1424 = vand.u32 %v1277, 4294901760
        %v1425 = vsub.f32 %v1277, %v1424
        %1426 = vmatpush.msra.mxu0 %v1425
        %v1427 = vand.u32 %v1276, 4294901760
        %v1428 = vsub.f32 %v1276, %v1427
        %1429 = vmatpush.msra.mxu0 %v1428
        %v1430 = vand.u32 %v1275, 4294901760
        %v1431 = vsub.f32 %v1275, %v1430
        %1432 = vmatpush.msra.mxu0 %v1431
        %v1433 = vand.u32 %v1274, 4294901760
        %v1434 = vsub.f32 %v1274, %v1433
        %1435 = vmatpush.msra.mxu0 %v1434
        %v1436 = vand.u32 %v1273, 4294901760
        %v1437 = vsub.f32 %v1273, %v1436
        %1438 = vmatpush.msra.mxu0 %v1437
        %v1439 = vand.u32 %v1272, 4294901760
        %v1440 = vsub.f32 %v1272, %v1439
        %1441 = vmatpush.msra.mxu0 %v1440
        %v1442 = vand.u32 %v1271, 4294901760
        %v1443 = vsub.f32 %v1271, %v1442
        %1444 = vmatpush.msra.mxu0 %v1443
        %v1445 = vand.u32 %v1270, 4294901760
        %v1446 = vsub.f32 %v1270, %v1445
        %1447 = vmatpush.msra.mxu0 %v1446
        %v1448 = vand.u32 %v1269, 4294901760
        %v1449 = vsub.f32 %v1269, %v1448
        %1450 = vmatpush.msra.mxu0 %v1449
        %v1451 = vand.u32 %v1268, 4294901760
        %v1452 = vsub.f32 %v1268, %v1451
        %1453 = vmatpush.msra.mxu0 %v1452
        %v1454 = vand.u32 %v1267, 4294901760
        %v1455 = vsub.f32 %v1267, %v1454
        %1456 = vmatpush.msra.mxu0 %v1455
        %v1457 = vand.u32 %v1266, 4294901760
        %v1458 = vsub.f32 %v1266, %v1457
        %1459 = vmatpush.msra.mxu0 %v1458
        %v1460 = vand.u32 %v1265, 4294901760
        %v1461 = vsub.f32 %v1265, %v1460
        %1462 = vmatpush.msra.mxu0 %v1461
        %v1463 = vand.u32 %v1264, 4294901760
        %v1464 = vsub.f32 %v1264, %v1463
        %1465 = vmatpush.msra.mxu0 %v1464
        %v1466 = vand.u32 %v1263, 4294901760
        %v1467 = vsub.f32 %v1263, %v1466
        %1468 = vmatpush.msra.mxu0 %v1467
        %v1469 = vand.u32 %v1262, 4294901760
        %v1470 = vsub.f32 %v1262, %v1469
        %1471 = vmatmul.f32.gmra.mxu0 %v1470
        %v1472 = vpop.f32.mrf.mxu0
        %v1473 = vadd.f32 %v1419, %v1472
        %1474 = vdwg.mxu0
        %v1475 = vand.u32 %v1278, 4294901760
        %1476 = vmatpush.msra.mxu0 %v1475
        %v1477 = vand.u32 %v1277, 4294901760
        %1478 = vmatpush.msra.mxu0 %v1477
        %v1479 = vand.u32 %v1276, 4294901760
        %1480 = vmatpush.msra.mxu0 %v1479
        %v1481 = vand.u32 %v1275, 4294901760
        %1482 = vmatpush.msra.mxu0 %v1481
        %v1483 = vand.u32 %v1274, 4294901760
        %1484 = vmatpush.msra.mxu0 %v1483
        %v1485 = vand.u32 %v1273, 4294901760
        %1486 = vmatpush.msra.mxu0 %v1485
        %v1487 = vand.u32 %v1272, 4294901760
        %1488 = vmatpush.msra.mxu0 %v1487
        %v1489 = vand.u32 %v1271, 4294901760
        %1490 = vmatpush.msra.mxu0 %v1489
        %v1491 = vand.u32 %v1270, 4294901760
        %1492 = vmatpush.msra.mxu0 %v1491
        %v1493 = vand.u32 %v1269, 4294901760
        %1494 = vmatpush.msra.mxu0 %v1493
        %v1495 = vand.u32 %v1268, 4294901760
        %1496 = vmatpush.msra.mxu0 %v1495
        %v1497 = vand.u32 %v1267, 4294901760
        %1498 = vmatpush.msra.mxu0 %v1497
        %v1499 = vand.u32 %v1266, 4294901760
        %1500 = vmatpush.msra.mxu0 %v1499
        %v1501 = vand.u32 %v1265, 4294901760
        %1502 = vmatpush.msra.mxu0 %v1501
        %v1503 = vand.u32 %v1264, 4294901760
        %1504 = vmatpush.msra.mxu0 %v1503
        %v1505 = vand.u32 %v1263, 4294901760
        %1506 = vmatpush.msra.mxu0 %v1505
        %v1507 = vand.u32 %v1262, 4294901760
        %v1508 = vsub.f32 %v1262, %v1507
        %v1509 = vand.u32 %v1508, 4294901760
        %1510 = vmatmul.f32.gmra.mxu0 %v1509
        %v1511 = vpop.f32.mrf.mxu0
        %v1512 = vadd.f32 %v1473, %v1511
        %1513 = vdwg.mxu0
        %v1514 = vand.u32 %v1278, 4294901760
        %v1515 = vsub.f32 %v1278, %v1514
        %v1516 = vand.u32 %v1515, 4294901760
        %1517 = vmatpush.msra.mxu0 %v1516
        %v1518 = vand.u32 %v1277, 4294901760
        %v1519 = vsub.f32 %v1277, %v1518
        %v1520 = vand.u32 %v1519, 4294901760
        %1521 = vmatpush.msra.mxu0 %v1520
        %v1522 = vand.u32 %v1276, 4294901760
        %v1523 = vsub.f32 %v1276, %v1522
        %v1524 = vand.u32 %v1523, 4294901760
        %1525 = vmatpush.msra.mxu0 %v1524
        %v1526 = vand.u32 %v1275, 4294901760
        %v1527 = vsub.f32 %v1275, %v1526
        %v1528 = vand.u32 %v1527, 4294901760
        %1529 = vmatpush.msra.mxu0 %v1528
        %v1530 = vand.u32 %v1274, 4294901760
        %v1531 = vsub.f32 %v1274, %v1530
        %v1532 = vand.u32 %v1531, 4294901760
        %1533 = vmatpush.msra.mxu0 %v1532
        %v1534 = vand.u32 %v1273, 4294901760
        %v1535 = vsub.f32 %v1273, %v1534
        %v1536 = vand.u32 %v1535, 4294901760
        %1537 = vmatpush.msra.mxu0 %v1536
        %v1538 = vand.u32 %v1272, 4294901760
        %v1539 = vsub.f32 %v1272, %v1538
        %v1540 = vand.u32 %v1539, 4294901760
        %1541 = vmatpush.msra.mxu0 %v1540
        %v1542 = vand.u32 %v1271, 4294901760
        %v1543 = vsub.f32 %v1271, %v1542
        %v1544 = vand.u32 %v1543, 4294901760
        %1545 = vmatpush.msra.mxu0 %v1544
        %v1546 = vand.u32 %v1270, 4294901760
        %v1547 = vsub.f32 %v1270, %v1546
        %v1548 = vand.u32 %v1547, 4294901760
        %1549 = vmatpush.msra.mxu0 %v1548
        %v1550 = vand.u32 %v1269, 4294901760
        %v1551 = vsub.f32 %v1269, %v1550
        %v1552 = vand.u32 %v1551, 4294901760
        %1553 = vmatpush.msra.mxu0 %v1552
        %v1554 = vand.u32 %v1268, 4294901760
        %v1555 = vsub.f32 %v1268, %v1554
        %v1556 = vand.u32 %v1555, 4294901760
        %1557 = vmatpush.msra.mxu0 %v1556
        %v1558 = vand.u32 %v1267, 4294901760
        %v1559 = vsub.f32 %v1267, %v1558
        %v1560 = vand.u32 %v1559, 4294901760
        %1561 = vmatpush.msra.mxu0 %v1560
        %v1562 = vand.u32 %v1266, 4294901760
        %v1563 = vsub.f32 %v1266, %v1562
        %v1564 = vand.u32 %v1563, 4294901760
        %1565 = vmatpush.msra.mxu0 %v1564
        %v1566 = vand.u32 %v1265, 4294901760
        %v1567 = vsub.f32 %v1265, %v1566
        %v1568 = vand.u32 %v1567, 4294901760
        %1569 = vmatpush.msra.mxu0 %v1568
        %v1570 = vand.u32 %v1264, 4294901760
        %v1571 = vsub.f32 %v1264, %v1570
        %v1572 = vand.u32 %v1571, 4294901760
        %1573 = vmatpush.msra.mxu0 %v1572
        %v1574 = vand.u32 %v1263, 4294901760
        %v1575 = vsub.f32 %v1263, %v1574
        %v1576 = vand.u32 %v1575, 4294901760
        %1577 = vmatpush.msra.mxu0 %v1576
        %v1578 = vand.u32 %v1262, 4294901760
        %1579 = vmatmul.f32.gmra.mxu0 %v1578
        %v1580 = vpop.f32.mrf.mxu0
        %v1581 = vadd.f32 %v1512, %v1580
        %1582 = vdwg.mxu0
        %v1583 = vand.u32 %v1278, 4294901760
        %1584 = vmatpush.msra.mxu0 %v1583
        %v1585 = vand.u32 %v1277, 4294901760
        %1586 = vmatpush.msra.mxu0 %v1585
        %v1587 = vand.u32 %v1276, 4294901760
        %1588 = vmatpush.msra.mxu0 %v1587
        %v1589 = vand.u32 %v1275, 4294901760
        %1590 = vmatpush.msra.mxu0 %v1589
        %v1591 = vand.u32 %v1274, 4294901760
        %1592 = vmatpush.msra.mxu0 %v1591
        %v1593 = vand.u32 %v1273, 4294901760
        %1594 = vmatpush.msra.mxu0 %v1593
        %v1595 = vand.u32 %v1272, 4294901760
        %1596 = vmatpush.msra.mxu0 %v1595
        %v1597 = vand.u32 %v1271, 4294901760
        %1598 = vmatpush.msra.mxu0 %v1597
        %v1599 = vand.u32 %v1270, 4294901760
        %1600 = vmatpush.msra.mxu0 %v1599
        %v1601 = vand.u32 %v1269, 4294901760
        %1602 = vmatpush.msra.mxu0 %v1601
        %v1603 = vand.u32 %v1268, 4294901760
        %1604 = vmatpush.msra.mxu0 %v1603
        %v1605 = vand.u32 %v1267, 4294901760
        %1606 = vmatpush.msra.mxu0 %v1605
        %v1607 = vand.u32 %v1266, 4294901760
        %1608 = vmatpush.msra.mxu0 %v1607
        %v1609 = vand.u32 %v1265, 4294901760
        %1610 = vmatpush.msra.mxu0 %v1609
        %v1611 = vand.u32 %v1264, 4294901760
        %1612 = vmatpush.msra.mxu0 %v1611
        %v1613 = vand.u32 %v1263, 4294901760
        %1614 = vmatpush.msra.mxu0 %v1613
        %v1615 = vand.u32 %v1262, 4294901760
        %1616 = vmatmul.f32.gmra.mxu0 %v1615
        %v1617 = vpop.f32.mrf.mxu0
        %v1618 = vadd.f32 %v1581, %v1617
        %1619 = vdwg.mxu0
        %v1620 = vrsqrt.pop %v1618
        %v1621 = vmul.f32 %v1620, %v1618
        %v1622 = vmul.f32 %v1621, %v1620
        %v1623 = vmul.f32 0.5, %v1622
        %v1624 = vsub.f32 1.5, %v1623
        %v1625 = vmul.f32 %v1620, %v1624
        %vm1626 = vweird.f32 %v1618
        %vm1627 = vweird.f32 %v1620
        %vm1628 = vmor %vm1626, %vm1627
        %v1629 = vsel %vm1628, %v1620, %v1625
        %v1630 = vmul.f32 %v864, %v1629
        %1631 = vst [vmem:[%s442] sm:$0xff] %v1630
        %v1632 = vld [vmem:[#allocation7] sm:$0xff]
        %v1633 = vld [vmem:[#allocation7 + $0x8] sm:$0xff]
        %vm1634 = vcmask 130048
        %v1636 = vsel %vm1634, %v1261, 0
        %1638 = vmatpush.msra.mxu0 0.0
        %1639 = vmatpush.msra.mxu0 0.0
        %1640 = vmatpush.msra.mxu0 0.0
        %1641 = vmatpush.msra.mxu0 0.0
        %1642 = vmatpush.msra.mxu0 0.0
        %1643 = vmatpush.msra.mxu0 0.0
        %1644 = vmatpush.msra.mxu0 0.0
        %1645 = vmatpush.msra.mxu0 0.0
        %1646 = vmatpush.msra.mxu0 0.0
        %1647 = vmatpush.msra.mxu0 0.0
        %1648 = vmatpush.msra.mxu0 0.0
        %1649 = vmatpush.msra.mxu0 0.0
        %1650 = vmatpush.msra.mxu0 0.0
        %1651 = vmatpush.msra.mxu0 0.0
        %v1652 = vand.u32 %v1633, 4294901760
        %1653 = vmatpush.msra.mxu0 %v1652
        %v1654 = vand.u32 %v1632, 4294901760
        %1655 = vmatpush.msra.mxu0 %v1654
        %v1656 = vand.u32 %v1636, 4294901760
        %v1657 = vsub.f32 %v1636, %v1656
        %v1658 = vand.u32 %v1657, 4294901760
        %v1659 = vsub.f32 %v1657, %v1658
        %v1660 = vand.u32 %v1659, 4294901760
        %1661 = vmatmul.f32.gmra.mxu0 %v1660
        %v1662 = vpop.f32.mrf.mxu0
        %v1663 = vadd.f32 0.0, %v1662
        %1664 = vdwg.mxu0
        %1665 = vmatpush.msra.mxu0 0.0
        %1666 = vmatpush.msra.mxu0 0.0
        %1667 = vmatpush.msra.mxu0 0.0
        %1668 = vmatpush.msra.mxu0 0.0
        %1669 = vmatpush.msra.mxu0 0.0
        %1670 = vmatpush.msra.mxu0 0.0
        %1671 = vmatpush.msra.mxu0 0.0
        %1672 = vmatpush.msra.mxu0 0.0
        %1673 = vmatpush.msra.mxu0 0.0
        %1674 = vmatpush.msra.mxu0 0.0
        %1675 = vmatpush.msra.mxu0 0.0
        %1676 = vmatpush.msra.mxu0 0.0
        %1677 = vmatpush.msra.mxu0 0.0
        %1678 = vmatpush.msra.mxu0 0.0
        %v1679 = vand.u32 %v1633, 4294901760
        %v1680 = vsub.f32 %v1633, %v1679
        %v1681 = vand.u32 %v1680, 4294901760
        %v1682 = vsub.f32 %v1680, %v1681
        %v1683 = vand.u32 %v1682, 4294901760
        %1684 = vmatpush.msra.mxu0 %v1683
        %v1685 = vand.u32 %v1632, 4294901760
        %v1686 = vsub.f32 %v1632, %v1685
        %v1687 = vand.u32 %v1686, 4294901760
        %v1688 = vsub.f32 %v1686, %v1687
        %v1689 = vand.u32 %v1688, 4294901760
        %1690 = vmatpush.msra.mxu0 %v1689
        %v1691 = vand.u32 %v1636, 4294901760
        %1692 = vmatmul.f32.gmra.mxu0 %v1691
        %v1693 = vpop.f32.mrf.mxu0
        %v1694 = vadd.f32 %v1663, %v1693
        %1695 = vdwg.mxu0
        %1696 = vmatpush.msra.mxu0 0.0
        %1697 = vmatpush.msra.mxu0 0.0
        %1698 = vmatpush.msra.mxu0 0.0
        %1699 = vmatpush.msra.mxu0 0.0
        %1700 = vmatpush.msra.mxu0 0.0
        %1701 = vmatpush.msra.mxu0 0.0
        %1702 = vmatpush.msra.mxu0 0.0
        %1703 = vmatpush.msra.mxu0 0.0
        %1704 = vmatpush.msra.mxu0 0.0
        %1705 = vmatpush.msra.mxu0 0.0
        %1706 = vmatpush.msra.mxu0 0.0
        %1707 = vmatpush.msra.mxu0 0.0
        %1708 = vmatpush.msra.mxu0 0.0
        %1709 = vmatpush.msra.mxu0 0.0
        %v1710 = vand.u32 %v1633, 4294901760
        %v1711 = vsub.f32 %v1633, %v1710
        %1712 = vmatpush.msra.mxu0 %v1711
        %v1713 = vand.u32 %v1632, 4294901760
        %v1714 = vsub.f32 %v1632, %v1713
        %1715 = vmatpush.msra.mxu0 %v1714
        %v1716 = vand.u32 %v1636, 4294901760
        %v1717 = vsub.f32 %v1636, %v1716
        %1718 = vmatmul.f32.gmra.mxu0 %v1717
        %v1719 = vpop.f32.mrf.mxu0
        %v1720 = vadd.f32 %v1694, %v1719
        %1721 = vdwg.mxu0
        %1722 = vmatpush.msra.mxu0 0.0
        %1723 = vmatpush.msra.mxu0 0.0
        %1724 = vmatpush.msra.mxu0 0.0
        %1725 = vmatpush.msra.mxu0 0.0
        %1726 = vmatpush.msra.mxu0 0.0
        %1727 = vmatpush.msra.mxu0 0.0
        %1728 = vmatpush.msra.mxu0 0.0
        %1729 = vmatpush.msra.mxu0 0.0
        %1730 = vmatpush.msra.mxu0 0.0
        %1731 = vmatpush.msra.mxu0 0.0
        %1732 = vmatpush.msra.mxu0 0.0
        %1733 = vmatpush.msra.mxu0 0.0
        %1734 = vmatpush.msra.mxu0 0.0
        %1735 = vmatpush.msra.mxu0 0.0
        %v1736 = vand.u32 %v1633, 4294901760
        %1737 = vmatpush.msra.mxu0 %v1736
        %v1738 = vand.u32 %v1632, 4294901760
        %1739 = vmatpush.msra.mxu0 %v1738
        %v1740 = vand.u32 %v1636, 4294901760
        %v1741 = vsub.f32 %v1636, %v1740
        %v1742 = vand.u32 %v1741, 4294901760
        %1743 = vmatmul.f32.gmra.mxu0 %v1742
        %v1744 = vpop.f32.mrf.mxu0
        %v1745 = vadd.f32 %v1720, %v1744
        %1746 = vdwg.mxu0
        %1747 = vmatpush.msra.mxu0 0.0
        %1748 = vmatpush.msra.mxu0 0.0
        %1749 = vmatpush.msra.mxu0 0.0
        %1750 = vmatpush.msra.mxu0 0.0
        %1751 = vmatpush.msra.mxu0 0.0
        %1752 = vmatpush.msra.mxu0 0.0
        %1753 = vmatpush.msra.mxu0 0.0
        %1754 = vmatpush.msra.mxu0 0.0
        %1755 = vmatpush.msra.mxu0 0.0
        %1756 = vmatpush.msra.mxu0 0.0
        %1757 = vmatpush.msra.mxu0 0.0
        %1758 = vmatpush.msra.mxu0 0.0
        %1759 = vmatpush.msra.mxu0 0.0
        %1760 = vmatpush.msra.mxu0 0.0
        %v1761 = vand.u32 %v1633, 4294901760
        %v1762 = vsub.f32 %v1633, %v1761
        %v1763 = vand.u32 %v1762, 4294901760
        %1764 = vmatpush.msra.mxu0 %v1763
        %v1765 = vand.u32 %v1632, 4294901760
        %v1766 = vsub.f32 %v1632, %v1765
        %v1767 = vand.u32 %v1766, 4294901760
        %1768 = vmatpush.msra.mxu0 %v1767
        %v1769 = vand.u32 %v1636, 4294901760
        %1770 = vmatmul.f32.gmra.mxu0 %v1769
        %v1771 = vpop.f32.mrf.mxu0
        %v1772 = vadd.f32 %v1745, %v1771
        %1773 = vdwg.mxu0
        %1774 = vmatpush.msra.mxu0 0.0
        %1775 = vmatpush.msra.mxu0 0.0
        %1776 = vmatpush.msra.mxu0 0.0
        %1777 = vmatpush.msra.mxu0 0.0
        %1778 = vmatpush.msra.mxu0 0.0
        %1779 = vmatpush.msra.mxu0 0.0
        %1780 = vmatpush.msra.mxu0 0.0
        %1781 = vmatpush.msra.mxu0 0.0
        %1782 = vmatpush.msra.mxu0 0.0
        %1783 = vmatpush.msra.mxu0 0.0
        %1784 = vmatpush.msra.mxu0 0.0
        %1785 = vmatpush.msra.mxu0 0.0
        %1786 = vmatpush.msra.mxu0 0.0
        %1787 = vmatpush.msra.mxu0 0.0
        %v1788 = vand.u32 %v1633, 4294901760
        %1789 = vmatpush.msra.mxu0 %v1788
        %v1790 = vand.u32 %v1632, 4294901760
        %1791 = vmatpush.msra.mxu0 %v1790
        %v1792 = vand.u32 %v1636, 4294901760
        %1793 = vmatmul.f32.gmra.mxu0 %v1792
        %v1794 = vpop.f32.mrf.mxu0
        %v1795 = vadd.f32 %v1772, %v1794
        %1796 = vdwg.mxu0
        %v1797 = vsub.f32 %v1261, %v1795
        %v1798 = vmul.f32 %v1797, %v1797
        %v1800 = vsel %vm1634, %v1798, 0
        %1802 = vmatpush.msra.mxu0 0.0
        %1803 = vmatpush.msra.mxu0 0.0
        %1804 = vmatpush.msra.mxu0 0.0
        %1805 = vmatpush.msra.mxu0 0.0
        %1806 = vmatpush.msra.mxu0 0.0
        %1807 = vmatpush.msra.mxu0 0.0
        %1808 = vmatpush.msra.mxu0 0.0
        %1809 = vmatpush.msra.mxu0 0.0
        %1810 = vmatpush.msra.mxu0 0.0
        %1811 = vmatpush.msra.mxu0 0.0
        %1812 = vmatpush.msra.mxu0 0.0
        %1813 = vmatpush.msra.mxu0 0.0
        %1814 = vmatpush.msra.mxu0 0.0
        %1815 = vmatpush.msra.mxu0 0.0
        %v1816 = vand.u32 %v1633, 4294901760
        %1817 = vmatpush.msra.mxu0 %v1816
        %v1818 = vand.u32 %v1632, 4294901760
        %1819 = vmatpush.msra.mxu0 %v1818
        %v1820 = vand.u32 %v1800, 4294901760
        %v1821 = vsub.f32 %v1800, %v1820
        %v1822 = vand.u32 %v1821, 4294901760
        %v1823 = vsub.f32 %v1821, %v1822
        %v1824 = vand.u32 %v1823, 4294901760
        %1825 = vmatmul.f32.gmra.mxu0 %v1824
        %v1826 = vpop.f32.mrf.mxu0
        %v1827 = vadd.f32 1e-05, %v1826
        %1828 = vdwg.mxu0
        %1829 = vmatpush.msra.mxu0 0.0
        %1830 = vmatpush.msra.mxu0 0.0
        %1831 = vmatpush.msra.mxu0 0.0
        %1832 = vmatpush.msra.mxu0 0.0
        %1833 = vmatpush.msra.mxu0 0.0
        %1834 = vmatpush.msra.mxu0 0.0
        %1835 = vmatpush.msra.mxu0 0.0
        %1836 = vmatpush.msra.mxu0 0.0
        %1837 = vmatpush.msra.mxu0 0.0
        %1838 = vmatpush.msra.mxu0 0.0
        %1839 = vmatpush.msra.mxu0 0.0
        %1840 = vmatpush.msra.mxu0 0.0
        %1841 = vmatpush.msra.mxu0 0.0
        %1842 = vmatpush.msra.mxu0 0.0
        %v1843 = vand.u32 %v1633, 4294901760
        %v1844 = vsub.f32 %v1633, %v1843
        %v1845 = vand.u32 %v1844, 4294901760
        %v1846 = vsub.f32 %v1844, %v1845
        %v1847 = vand.u32 %v1846, 4294901760
        %1848 = vmatpush.msra.mxu0 %v1847
        %v1849 = vand.u32 %v1632, 4294901760
        %v1850 = vsub.f32 %v1632, %v1849
        %v1851 = vand.u32 %v1850, 4294901760
        %v1852 = vsub.f32 %v1850, %v1851
        %v1853 = vand.u32 %v1852, 4294901760
        %1854 = vmatpush.msra.mxu0 %v1853
        %v1855 = vand.u32 %v1800, 4294901760
        %1856 = vmatmul.f32.gmra.mxu0 %v1855
        %v1857 = vpop.f32.mrf.mxu0
        %v1858 = vadd.f32 %v1827, %v1857
        %1859 = vdwg.mxu0
        %1860 = vmatpush.msra.mxu0 0.0
        %1861 = vmatpush.msra.mxu0 0.0
        %1862 = vmatpush.msra.mxu0 0.0
        %1863 = vmatpush.msra.mxu0 0.0
        %1864 = vmatpush.msra.mxu0 0.0
        %1865 = vmatpush.msra.mxu0 0.0
        %1866 = vmatpush.msra.mxu0 0.0
        %1867 = vmatpush.msra.mxu0 0.0
        %1868 = vmatpush.msra.mxu0 0.0
        %1869 = vmatpush.msra.mxu0 0.0
        %1870 = vmatpush.msra.mxu0 0.0
        %1871 = vmatpush.msra.mxu0 0.0
        %1872 = vmatpush.msra.mxu0 0.0
        %1873 = vmatpush.msra.mxu0 0.0
        %v1874 = vand.u32 %v1633, 4294901760
        %v1875 = vsub.f32 %v1633, %v1874
        %1876 = vmatpush.msra.mxu0 %v1875
        %v1877 = vand.u32 %v1632, 4294901760
        %v1878 = vsub.f32 %v1632, %v1877
        %1879 = vmatpush.msra.mxu0 %v1878
        %v1880 = vand.u32 %v1800, 4294901760
        %v1881 = vsub.f32 %v1800, %v1880
        %1882 = vmatmul.f32.gmra.mxu0 %v1881
        %v1883 = vpop.f32.mrf.mxu0
        %v1884 = vadd.f32 %v1858, %v1883
        %1885 = vdwg.mxu0
        %1886 = vmatpush.msra.mxu0 0.0
        %1887 = vmatpush.msra.mxu0 0.0
        %1888 = vmatpush.msra.mxu0 0.0
        %1889 = vmatpush.msra.mxu0 0.0
        %1890 = vmatpush.msra.mxu0 0.0
        %1891 = vmatpush.msra.mxu0 0.0
        %1892 = vmatpush.msra.mxu0 0.0
        %1893 = vmatpush.msra.mxu0 0.0
        %1894 = vmatpush.msra.mxu0 0.0
        %1895 = vmatpush.msra.mxu0 0.0
        %1896 = vmatpush.msra.mxu0 0.0
        %1897 = vmatpush.msra.mxu0 0.0
        %1898 = vmatpush.msra.mxu0 0.0
        %1899 = vmatpush.msra.mxu0 0.0
        %v1900 = vand.u32 %v1633, 4294901760
        %1901 = vmatpush.msra.mxu0 %v1900
        %v1902 = vand.u32 %v1632, 4294901760
        %1903 = vmatpush.msra.mxu0 %v1902
        %v1904 = vand.u32 %v1800, 4294901760
        %v1905 = vsub.f32 %v1800, %v1904
        %v1906 = vand.u32 %v1905, 4294901760
        %1907 = vmatmul.f32.gmra.mxu0 %v1906
        %v1908 = vpop.f32.mrf.mxu0
        %v1909 = vadd.f32 %v1884, %v1908
        %1910 = vdwg.mxu0
        %1911 = vmatpush.msra.mxu0 0.0
        %1912 = vmatpush.msra.mxu0 0.0
        %1913 = vmatpush.msra.mxu0 0.0
        %1914 = vmatpush.msra.mxu0 0.0
        %1915 = vmatpush.msra.mxu0 0.0
        %1916 = vmatpush.msra.mxu0 0.0
        %1917 = vmatpush.msra.mxu0 0.0
        %1918 = vmatpush.msra.mxu0 0.0
        %1919 = vmatpush.msra.mxu0 0.0
        %1920 = vmatpush.msra.mxu0 0.0
        %1921 = vmatpush.msra.mxu0 0.0
        %1922 = vmatpush.msra.mxu0 0.0
        %1923 = vmatpush.msra.mxu0 0.0
        %1924 = vmatpush.msra.mxu0 0.0
        %v1925 = vand.u32 %v1633, 4294901760
        %v1926 = vsub.f32 %v1633, %v1925
        %v1927 = vand.u32 %v1926, 4294901760
        %1928 = vmatpush.msra.mxu0 %v1927
        %v1929 = vand.u32 %v1632, 4294901760
        %v1930 = vsub.f32 %v1632, %v1929
        %v1931 = vand.u32 %v1930, 4294901760
        %1932 = vmatpush.msra.mxu0 %v1931
        %v1933 = vand.u32 %v1800, 4294901760
        %1934 = vmatmul.f32.gmra.mxu0 %v1933
        %v1935 = vpop.f32.mrf.mxu0
        %v1936 = vadd.f32 %v1909, %v1935
        %1937 = vdwg.mxu0
        %1938 = vmatpush.msra.mxu0 0.0
        %1939 = vmatpush.msra.mxu0 0.0
        %1940 = vmatpush.msra.mxu0 0.0
        %1941 = vmatpush.msra.mxu0 0.0
        %1942 = vmatpush.msra.mxu0 0.0
        %1943 = vmatpush.msra.mxu0 0.0
        %1944 = vmatpush.msra.mxu0 0.0
        %1945 = vmatpush.msra.mxu0 0.0
        %1946 = vmatpush.msra.mxu0 0.0
        %1947 = vmatpush.msra.mxu0 0.0
        %1948 = vmatpush.msra.mxu0 0.0
        %1949 = vmatpush.msra.mxu0 0.0
        %1950 = vmatpush.msra.mxu0 0.0
        %1951 = vmatpush.msra.mxu0 0.0
        %v1952 = vand.u32 %v1633, 4294901760
        %1953 = vmatpush.msra.mxu0 %v1952
        %v1954 = vand.u32 %v1632, 4294901760
        %1955 = vmatpush.msra.mxu0 %v1954
        %v1956 = vand.u32 %v1800, 4294901760
        %1957 = vmatmul.f32.gmra.mxu0 %v1956
        %v1958 = vpop.f32.mrf.mxu0
        %v1959 = vadd.f32 %v1936, %v1958
        %1960 = vdwg.mxu0
        %v1961 = vrsqrt.pop %v1959
        %v1962 = vmul.f32 %v1961, %v1959
        %v1963 = vmul.f32 %v1962, %v1961
        %v1964 = vmul.f32 0.5, %v1963
        %v1965 = vsub.f32 1.5, %v1964
        %v1966 = vmul.f32 %v1961, %v1965
        %vm1967 = vweird.f32 %v1959
        %vm1968 = vweird.f32 %v1961
        %vm1969 = vmor %vm1967, %vm1968
        %v1970 = vsel %vm1969, %v1961, %v1966
        %v1971 = vmul.f32 %v1797, %v1970
        %1972 = vst.msk [vmem:[%s449] sm:$0xff] %vm1634, %v1971
        %s1973 = sand.u32 %s259, 1
        %s1974 = scalar_lea.sflag [#allocation4], %s1973
        %s1975 = sand.u32 %s259, 1
        %s1976 = smul.addr %s1975, 8
        %s1977 = scalar_lea.vmem [#allocation8], %s1976
        %s1978 = sand.u32 %s285, 1
        %s1979 = scalar_lea.sflag [#allocation10], %s1978
        %s1980 = sand.u32 %s285, 1
        %s1981 = smul.addr %s1980, 8
        %s1982 = scalar_lea.vmem [#allocation9], %s1981
        // Predicated region
        $region73: #{tpu_custom_call.1} parent=59 // pred_check
          %p1983 = pneg %p269
        $region74: #{tpu_custom_call.1} parent=59 // pred_check_branch
          %1985 = sbr.rel (%p1983) target = $region76
        $region75: #{tpu_custom_call.1} parent=59 // pred_region
          %1987 = vsyncadd %s1974, 0
          %s1988 = smul.addr %s31, 8
          %s1989 = scalar_lea.hbm %s10, %s1988
          %s1991 = sshll.u32 %s1977, 4
          %s1992 = int_to_ptr.vmem [resolvable:$true] %s1991
          %s1993 = sshll.u32 %s1989, 4
          %s1994 = int_to_ptr.hbm [resolvable:$true] %s1993
          %1996 = dma.vmem_to_hbm [thread:$0]  %s1992, 128, %s1994, %s1974
        $region76: #{tpu_custom_call.1} parent=59 // pred_fallthru
          _
        // Predicated region
        $region77: #{tpu_custom_call.1} parent=59 // pred_check
          %p1997 = pneg %p295
        $region78: #{tpu_custom_call.1} parent=59 // pred_check_branch
          %1999 = sbr.rel (%p1997) target = $region80
        $region79: #{tpu_custom_call.1} parent=59 // pred_region
          %2001 = vsyncadd %s1979, 0
          %s2002 = smul.addr %s31, 8
          %s2003 = scalar_lea.hbm %s11, %s2002
          %s2005 = sshll.u32 %s1982, 4
          %s2006 = int_to_ptr.vmem [resolvable:$true] %s2005
          %s2007 = sshll.u32 %s2003, 4
          %s2008 = int_to_ptr.hbm [resolvable:$true] %s2007
          %2010 = dma.vmem_to_hbm [thread:$0]  %s2006, 128, %s2008, %s1979
        $region80: #{tpu_custom_call.1} parent=59 // pred_fallthru
          _
      $region60: #{tpu_custom_call.1} parent=5 // pred_fallthru
        _
      %p2011 = scmp.le.s32.totalorder 2, %s26
      // Predicated region
      $region81: #{tpu_custom_call.1} parent=5 // pred_check
        %p2012 = pneg %p2011
      $region82: #{tpu_custom_call.1} parent=5 // pred_check_branch
        %2014 = sbr.rel (%p2012) target = $region84
      $region83: #{tpu_custom_call.1} parent=5 // pred_region
        %s2015 = ssub.s32 %s26, 2
        // Predicated region
        $region85: #{tpu_custom_call.1} parent=83 // pred_check
          %p2016 = pneg %p275
        $region86: #{tpu_custom_call.1} parent=83 // pred_check_branch
          %2018 = sbr.rel (%p2016) target = $region88
        $region87: #{tpu_custom_call.1} parent=83 // pred_region
          %s2019 = sand.u32 %s260, 1
          %s2020 = scalar_lea.sflag [#allocation4], %s2019
          %s2021 = sand.u32 %s260, 1
          %s2022 = smul.addr %s2021, 8
          %s2023 = scalar_lea.vmem [#allocation8], %s2022
          %2025 = dma.done %s2020, 128
        $region88: #{tpu_custom_call.1} parent=83 // pred_fallthru
          _
        // Predicated region
        $region89: #{tpu_custom_call.1} parent=83 // pred_check
          %p2026 = pneg %p301
        $region90: #{tpu_custom_call.1} parent=83 // pred_check_branch
          %2028 = sbr.rel (%p2026) target = $region92
        $region91: #{tpu_custom_call.1} parent=83 // pred_region
          %s2029 = sand.u32 %s286, 1
          %s2030 = scalar_lea.sflag [#allocation10], %s2029
          %s2031 = sand.u32 %s286, 1
          %s2032 = smul.addr %s2031, 8
          %s2033 = scalar_lea.vmem [#allocation9], %s2032
          %2035 = dma.done %s2030, 128
        $region92: #{tpu_custom_call.1} parent=83 // pred_fallthru
          _
      $region84: #{tpu_custom_call.1} parent=5 // pred_fallthru
        _
    $region6: #{tpu_custom_call.1} parent=1 // loop_footer
      %s30 = sadd.s32 1, %s26
    $region7: #{tpu_custom_call.1} parent=1 // loop_footer_branch
      %25 = sbr.rel target = $region3
    $region8: #{tpu_custom_call.1} parent=1 // loop_exit
      _
    %2036 = vsyncpa [#allocation3], 1
    %s2037 = scalar_lea.sflag [#allocation3], 1
    %2038 = vsyncpa %s2037, 1
    %2039 = vsyncpa [#allocation6], 1
    %2040 = vsyncpa [#allocation4], 1
    %s2041 = scalar_lea.sflag [#allocation4], 1
    %2042 = vsyncpa %s2041, 1
    %2043 = vsyncpa [#allocation10], 1
    %s2044 = scalar_lea.sflag [#allocation10], 1
    %2045 = vsyncpa %s2044, 1

</llo_original>
